<compile_context>
chip_gen: v7x
topology: tpu7x:2x2x1
jax: 0.10.0
libtpu: 0.0.40
codegen_flags: <defaults>
</compile_context>

<pallas_src>
import jax
import jax.numpy as jnp
from jax import lax
from jax.experimental import pallas as pl
from jax.experimental.pallas import tpu as pltpu

_VMEM_LIMIT = 32 * 1024 * 1024  # safe on v5e (128 MiB phys), v6e (128), v7x (64)


def _pick_spatial_tile(s, max_lanes=4096):
    """Largest multiple-of-128 divisor of s (<= max_lanes), else the full extent."""
    if s % 128 == 0:
        ts = min(s, max_lanes)
        ts -= ts % 128
        while s % ts != 0:
            ts -= 128
        return ts
    return s


def _stage_a(x3, w1, p1, w2m, *, inv_m1, eps1):
    """CnvMod (1x1 conv + train-BN + ReLU) fused with DecMod's conv and its BN stats.

    x3: (N, Cin, S) f32; w1: (128, Cin); p1: (128, 2) = [gamma1, beta1];
    w2m: (64, 128) = ConvTranspose weight viewed as (out, in).
    Returns:
      zc2 : (N, 64, S) f32   bias-free DecMod conv output  W2 @ relu(BN1(W1 @ x))
      st2 : (64, 2)  f32     per-channel [sum(zc2), sum(zc2^2)] over all N*S positions
    """
    n, cin, s = x3.shape
    c1 = w1.shape[0]      # 128
    c2 = w2m.shape[0]     # 64
    ts = _pick_spatial_tile(s)
    n_tiles = s // ts

    def kernel(x_ref, w1_ref, p1_ref, w2_ref, zc2_ref, st2_ref,
               s1_ref, q1_ref, sc1_ref, sh1_ref, s2_ref, q2_ref):
        phase = pl.program_id(0)
        bidx = pl.program_id(1)
        tidx = pl.program_id(2)
        first = jnp.logical_and(bidx == 0, tidx == 0)

        # Bias-free 1x1 conv == channel-mixing matmul on the MXU: (128,Cin)@(Cin,TS).
        # conv1's bias b1 cancels exactly under train-mode BN1 (the k=1,p=1 padded
        # border equals b1, so it contributes zero to the bias-centered stats and only
        # enters through the divisor m1), so it is never materialized.
        zc1 = jnp.dot(w1_ref[...], x_ref[...], preferred_element_type=jnp.float32)

        @pl.when(jnp.logical_and(phase == 0, first))
        def _init_stats1():
            s1_ref[...] = jnp.zeros_like(s1_ref)
            q1_ref[...] = jnp.zeros_like(q1_ref)

        @pl.when(phase == 0)
        def _accum_stats1():
            s1_ref[...] += jnp.sum(zc1, axis=1, keepdims=True)
            q1_ref[...] += jnp.sum(zc1 * zc1, axis=1, keepdims=True)

        @pl.when(jnp.logical_and(phase == 1, first))
        def _finalize_stats1():
            mu = s1_ref[...] * inv_m1                       # E[W1@x] over padded m1
            var = q1_ref[...] * inv_m1 - mu * mu            # biased variance
            scale = p1_ref[:, 0:1] * lax.rsqrt(var + eps1)  # gamma1 * rsqrt(var+eps)
            sc1_ref[...] = scale
            sh1_ref[...] = p1_ref[:, 1:2] - mu * scale      # beta1 - mu*scale
            s2_ref[...] = jnp.zeros_like(s2_ref)
            q2_ref[...] = jnp.zeros_like(q2_ref)

        @pl.when(phase == 1)
        def _normalize_and_stage2_stats():
            a1 = jnp.maximum(zc1 * sc1_ref[...] + sh1_ref[...], 0.0)   # BN1 + ReLU
            zc2 = jnp.dot(w2_ref[...], a1, preferred_element_type=jnp.float32)
            s2_ref[...] += jnp.sum(zc2, axis=1, keepdims=True)
            q2_ref[...] += jnp.sum(zc2 * zc2, axis=1, keepdims=True)
            zc2_ref[...] = zc2.astype(zc2_ref.dtype)
            # st2's block index is pinned -> exactly one HBM write-back at grid end,
            # carrying the totals written on the final grid step.
            st2_ref[:, 0:1] = s2_ref[...]
            st2_ref[:, 1:2] = q2_ref[...]

    return pl.pallas_call(
        kernel,
        out_shape=(jax.ShapeDtypeStruct((n, c2, s), jnp.float32),
                   jax.ShapeDtypeStruct((c2, 2), jnp.float32)),
        grid_spec=pltpu.PrefetchScalarGridSpec(
            num_scalar_prefetch=0,
            grid=(2, n, n_tiles),                 # (phase, batch, spatial tile)
            in_specs=[
                pl.BlockSpec((None, cin, ts), lambda p, bi, ti: (bi, 0, ti)),
                pl.BlockSpec((c1, cin), lambda p, bi, ti: (0, 0)),
                pl.BlockSpec((c1, 2), lambda p, bi, ti: (0, 0)),
                pl.BlockSpec((c2, c1), lambda p, bi, ti: (0, 0)),
            ],
            out_specs=[
                # Phase 0 never writes zc2: pin its block index to (0,0,0) there so the
                # pipeline never writes an uninitialized tile back to HBM (write-back
                # only happens on block-index change); phase 1 then visits and writes
                # every block exactly once.  NOTE: this is intentional and fragile --
                # do NOT touch zc2_ref in phase 0.
                pl.BlockSpec((None, c2, ts), lambda p, bi, ti: (bi * p, 0, ti * p)),
                pl.BlockSpec((c2, 2), lambda p, bi, ti: (0, 0)),
            ],
            scratch_shapes=[pltpu.VMEM((c1, 1), jnp.float32)] * 4   # sum1, ssq1, sc1, sh1
                         + [pltpu.VMEM((c2, 1), jnp.float32)] * 2,  # sum2, ssq2
        ),
        # Global BN statistics make every grid axis a carry/reduction axis.
        compiler_params=pltpu.CompilerParams(
            dimension_semantics=("arbitrary", "arbitrary", "arbitrary"),
            vmem_limit_bytes=_VMEM_LIMIT),
    )(x3, w1, p1, w2m)


def _stage_b(zc2, p2, w3, p3):
    """BN2 + ReLU + Map conv + LogSigmoid on the 64-channel intermediate.

    zc2: (N, 64, S); p2: (64, 2) = [scale2, shift2]; w3: (32, 64);
    p3: (32, 2) = [b3, logsigmoid(b3)].
    Returns (N, 32, S) f32 holding  logsigmoid(W3 @ relu(zc2*sc2+sh2) + b3) - logsig(b3)
    (the border constant is added back by the XLA pad+add epilogue).
    """
    n, c2, s = zc2.shape
    c3 = w3.shape[0]
    ts = _pick_spatial_tile(s)
    n_tiles = s // ts

    def kernel(z_ref, p2_ref, w3_ref, p3_ref, o_ref):
        a2 = jnp.maximum(z_ref[...] * p2_ref[:, 0:1] + p2_ref[:, 1:2], 0.0)
        z3 = jnp.dot(w3_ref[...], a2,
                     preferred_element_type=jnp.float32) + p3_ref[:, 0:1]
        # logsigmoid(z) = min(z, 0) - log(1 + exp(-|z|))
        ls = jnp.minimum(z3, 0.0) - jnp.log(1.0 + jnp.exp(-jnp.abs(z3)))
        o_ref[...] = (ls - p3_ref[:, 1:2]).astype(o_ref.dtype)

    return pl.pallas_call(
        kernel,
        out_shape=jax.ShapeDtypeStruct((n, c3, s), jnp.float32),
        grid_spec=pltpu.PrefetchScalarGridSpec(
            num_scalar_prefetch=0,
            grid=(n, n_tiles),
            in_specs=[
                pl.BlockSpec((None, c2, ts), lambda bi, ti: (bi, 0, ti)),
                pl.BlockSpec((c2, 2), lambda bi, ti: (0, 0)),
                pl.BlockSpec((c3, c2), lambda bi, ti: (0, 0)),
                pl.BlockSpec((c3, 2), lambda bi, ti: (0, 0)),
            ],
            out_specs=pl.BlockSpec((None, c3, ts), lambda bi, ti: (bi, 0, ti)),
        ),
        # No cross-tile carry: both axes can be split across v7x's two TensorCores.
        compiler_params=pltpu.CompilerParams(
            dimension_semantics=("parallel", "parallel"),
            vmem_limit_bytes=_VMEM_LIMIT),
    )(zc2, p2, w3, p3)


def decoder_track_a_forward(x, params):
    """x: (N, 256, H, W) -> (N, 32, H+2, W+2); matches DecoderTrackA.forward."""
    n, cin, h, w = x.shape
    s = h * w
    f32 = jnp.float32

    # Conv biases b1 / b2 are mathematically cancelled by the train-mode BatchNorms
    # that immediately follow them (see stage-A kernel comment), so they are unused.
    w1 = params["w1"].reshape(128, cin).astype(f32)          # Conv2d (out, in, 1, 1)
    w2m = params["w2"].reshape(128, 64).T.astype(f32)        # ConvT (in, out, 1, 1) -> (out, in)
    w3 = params["w3"].reshape(32, 64).astype(f32)            # Conv2d (out, in, 1, 1)

    p1 = jnp.stack([params["g1"], params["be1"]], axis=1).astype(f32)   # (128, 2)

    m1 = float(n * (h + 2) * (w + 2))   # BN1 sees the padded CnvMod output
    m2 = float(n * s)                   # BN2 sees only the cropped interior

    # Stage A: CnvMod + DecMod conv + BN2 statistics, single fused kernel.
    zc2, st2 = _stage_a(x.reshape(n, cin, s).astype(f32), w1, p1, w2m,
                        inv_m1=1.0 / m1, eps1=1e-3)

    # Finalize BN2 scale/shift (64-element math, fuses into a trivial XLA op).
    mean2 = st2[:, 0] / m2
    var2 = st2[:, 1] / m2 - mean2 * mean2
    sc2 = params["g2"].astype(f32) * lax.rsqrt(var2 + 1e-5)
    sh2 = params["be2"].astype(f32) - mean2 * sc2
    p2 = jnp.stack([sc2, sh2], axis=1)                                  # (64, 2)

    border_val = jax.nn.log_sigmoid(params["b3"].astype(f32))           # (32,)
    p3 = jnp.stack([params["b3"].astype(f32), border_val], axis=1)      # (32, 2)

    # Stage B: BN2 + ReLU + Map conv + logsigmoid (minus the border constant).
    d_int = _stage_b(zc2, p2, w3, p3).reshape(n, 32, h, w)

    # Map's k=1,p=1 conv pads its output; border == logsigmoid(bias3).  pad + add
    # fuses into a single XLA output pass (one read of the interior, one write).
    out = jnp.pad(d_int, ((0, 0), (0, 0), (1, 1), (1, 1)))
    return out + border_val[None, :, None, None]


def _reference(x, params):
    """Pure-JAX mirror of the PyTorch forward (train-mode BN, high-precision matmuls)."""
    hp = lax.Precision.HIGHEST
    w1 = params["w1"].reshape(128, -1)
    w2 = params["w2"].reshape(128, 64)
    w3 = params["w3"].reshape(32, 64)

    def pad_conv(xx, ww, bb):
        xp = jnp.pad(xx, ((0, 0), (0, 0), (1, 1), (1, 1)))
        return jnp.einsum("oc,nchw->nohw", ww, xp, precision=hp) + bb[None, :, None, None]

    def bn_relu(z, g, be, eps):
        m = jnp.mean(z, axis=(0, 2, 3), keepdims=True)
        v = jnp.mean((z - m) ** 2, axis=(0, 2, 3), keepdims=True)
        y = (z - m) / jnp.sqrt(v + eps) * g[None, :, None, None] + be[None, :, None, None]
        return jnp.maximum(y, 0.0)

    a1 = bn_relu(pad_conv(x, w1, params["b1"]), params["g1"], params["be1"], 1e-3)
    z2 = (jnp.einsum("co,nchw->nohw", w2, a1[:, :, 1:-1, 1:-1], precision=hp)
          + params["b2"][None, :, None, None])
    a2 = bn_relu(z2, params["g2"], params["be2"], 1e-5)
    return jax.nn.log_sigmoid(pad_conv(a2, w3, params["b3"]))


if __name__ == "__main__":
    key = jax.random.PRNGKey(0)
    ks = jax.random.split(key, 11)
    N, H, W = 2, 16, 16

    x = jax.random.normal(ks[0], (N, 256, H, W), dtype=jnp.float32)
    params = {
        # CnvMod: Conv2d(256,128,k=1,s=1,p=1) + BN(eps=1e-3) + ReLU
        "w1": 0.05 * jax.random.normal(ks[1], (128, 256, 1, 1), jnp.float32),
        "b1": 0.1 * jax.random.normal(ks[2], (128,), jnp.float32),
        "g1": 1.0 + 0.1 * jax.random.normal(ks[3], (128,), jnp.float32),
        "be1": 0.1 * jax.random.normal(ks[4], (128,), jnp.float32),
        # DecMod: ConvTranspose2d(128,64,k=1,s=1,p=1) + BN(eps=1e-5) + ReLU
        "w2": 0.05 * jax.random.normal(ks[5], (128, 64, 1, 1), jnp.float32),
        "b2": 0.1 * jax.random.normal(ks[6], (64,), jnp.float32),
        "g2": 1.0 + 0.1 * jax.random.normal(ks[7], (64,), jnp.float32),
        "be2": 0.1 * jax.random.normal(ks[8], (64,), jnp.float32),
        # Map: Conv2d(64,32,k=1,s=1,p=1) + LogSigmoid
        "w3": 0.05 * jax.random.normal(ks[9], (32, 64, 1, 1), jnp.float32),
        "b3": 0.1 * jax.random.normal(ks[10], (32,), jnp.float32),
    }

    out = jax.jit(decoder_track_a_forward)(x, params)
    out = jax.block_until_ready(out)

    ref = _reference(x, params)
    assert out.shape == (N, 32, H + 2, W + 2), out.shape
    max_err = float(jnp.max(jnp.abs(out - ref)))
    assert jnp.allclose(out, ref, atol=1e-3, rtol=1e-3), f"mismatch, max_err={max_err}"

    print("KERNEL_OK")
</pallas_src>

<mosaic_0001>
module attributes {stable_mosaic.version = 11 : i64} {
  func.func @kernel(%arg0: i32, %arg1: i32, %arg2: i32, %arg3: memref<1x256x256xf32, #tpu.memory_space<vmem>>, %arg4: memref<128x256xf32, #tpu.memory_space<vmem>>, %arg5: memref<128x2xf32, #tpu.memory_space<vmem>>, %arg6: memref<64x128xf32, #tpu.memory_space<vmem>>, %arg7: memref<1x64x256xf32, #tpu.memory_space<vmem>>, %arg8: memref<64x2xf32, #tpu.memory_space<vmem>>, %arg9: memref<128x1xf32, #tpu.memory_space<vmem>>, %arg10: memref<128x1xf32, #tpu.memory_space<vmem>>, %arg11: memref<128x1xf32, #tpu.memory_space<vmem>>, %arg12: memref<128x1xf32, #tpu.memory_space<vmem>>, %arg13: memref<64x1xf32, #tpu.memory_space<vmem>>, %arg14: memref<64x1xf32, #tpu.memory_space<vmem>>) attributes {dimension_semantics = [#tpu.dimension_semantics<arbitrary>, #tpu.dimension_semantics<arbitrary>, #tpu.dimension_semantics<arbitrary>], iteration_bounds = array<i64: 2, 2, 1>, scalar_prefetch = 0 : i64, scratch_operands = 6 : i64, tpu.core_type = #tpu.core_type<tc>, window_params = [{transform_indices = @transform_0, window_bounds = array<i64: 1, 256, 256>}, {pipeline_mode = #tpu.pipeline_mode<synchronous>, transform_indices = @transform_1, window_bounds = array<i64: 128, 256>}, {pipeline_mode = #tpu.pipeline_mode<synchronous>, transform_indices = @transform_2, window_bounds = array<i64: 128, 2>}, {pipeline_mode = #tpu.pipeline_mode<synchronous>, transform_indices = @transform_3, window_bounds = array<i64: 64, 128>}, {transform_indices = @transform_4, window_bounds = array<i64: 1, 64, 256>}, {pipeline_mode = #tpu.pipeline_mode<synchronous>, transform_indices = @transform_5, window_bounds = array<i64: 64, 2>}]} {
    %c0_i32 = arith.constant 0 : i32
    %0 = arith.cmpi eq, %arg1, %c0_i32 : i32
    %c0_i32_0 = arith.constant 0 : i32
    %1 = arith.cmpi eq, %arg2, %c0_i32_0 : i32
    %2 = arith.andi %0, %1 : i1
    %c0 = arith.constant 0 : index
    %c0_1 = arith.constant 0 : index
    %3 = vector.load %arg4[%c0, %c0_1] : memref<128x256xf32, #tpu.memory_space<vmem>>, vector<128x256xf32>
    %c0_2 = arith.constant 0 : index
    %c0_3 = arith.constant 0 : index
    %c0_4 = arith.constant 0 : index
    %4 = vector.load %arg3[%c0_2, %c0_3, %c0_4] : memref<1x256x256xf32, #tpu.memory_space<vmem>>, vector<1x256x256xf32>
    %5 = vector.shape_cast %4 : vector<1x256x256xf32> to vector<256x256xf32>
    %cst = arith.constant dense<0.000000e+00> : vector<128x256xf32>
    %6 = tpu.matmul %3, %5, %cst {dimension_numbers = #tpu.dot_dimension_numbers<[1], [0], [0], [1], [0, 0, 1, 1], [], []>} : vector<128x256xf32>, vector<256x256xf32>, vector<128x256xf32> -> vector<128x256xf32>
    %c0_i32_5 = arith.constant 0 : i32
    %7 = arith.cmpi eq, %arg0, %c0_i32_5 : i32
    %8 = arith.andi %7, %2 : i1
    %9 = arith.extui %8 : i1 to i32
    %c0_i32_6 = arith.constant 0 : i32
    %10 = arith.cmpi ne, %9, %c0_i32_6 : i32
    scf.if %10 {
      %cst_12 = arith.constant 0.000000e+00 : f32
      %21 = vector.broadcast %cst_12 : f32 to vector<128x1xf32>
      %c0_13 = arith.constant 0 : index
      %c0_14 = arith.constant 0 : index
      %22 = vector.load %arg9[%c0_13, %c0_14] : memref<128x1xf32, #tpu.memory_space<vmem>>, vector<128x1xf32>
      tpu.vector_store %arg9[%c0_13, %c0_14], %21 {strides = array<i32>} : memref<128x1xf32, #tpu.memory_space<vmem>>, vector<128x1xf32>,
      %cst_15 = arith.constant 0.000000e+00 : f32
      %23 = vector.broadcast %cst_15 : f32 to vector<128x1xf32>
      %c0_16 = arith.constant 0 : index
      %c0_17 = arith.constant 0 : index
      %24 = vector.load %arg10[%c0_16, %c0_17] : memref<128x1xf32, #tpu.memory_space<vmem>>, vector<128x1xf32>
      tpu.vector_store %arg10[%c0_16, %c0_17], %23 {strides = array<i32>} : memref<128x1xf32, #tpu.memory_space<vmem>>, vector<128x1xf32>,
    } else {
    }
    %c0_i32_7 = arith.constant 0 : i32
    %11 = arith.cmpi eq, %arg0, %c0_i32_7 : i32
    %12 = arith.extui %11 : i1 to i32
    %c0_i32_8 = arith.constant 0 : i32
    %13 = arith.cmpi ne, %12, %c0_i32_8 : i32
    scf.if %13 {
      %c0_12 = arith.constant 0 : index
      %c0_13 = arith.constant 0 : index
      %21 = vector.load %arg9[%c0_12, %c0_13] : memref<128x1xf32, #tpu.memory_space<vmem>>, vector<128x1xf32>
      %cst_14 = arith.constant dense<0.000000e+00> : vector<128xf32>
      %22 = vector.multi_reduction <add>, %6, %cst_14 [1] : vector<128x256xf32> to vector<128xf32>
      %23 = vector.shape_cast %22 : vector<128xf32> to vector<128x1xf32>
      %24 = arith.addf %21, %23 : vector<128x1xf32>
      %c0_15 = arith.constant 0 : index
      %c0_16 = arith.constant 0 : index
      %25 = vector.load %arg9[%c0_15, %c0_16] : memref<128x1xf32, #tpu.memory_space<vmem>>, vector<128x1xf32>
      tpu.vector_store %arg9[%c0_15, %c0_16], %24 {strides = array<i32>} : memref<128x1xf32, #tpu.memory_space<vmem>>, vector<128x1xf32>,
      %c0_17 = arith.constant 0 : index
      %c0_18 = arith.constant 0 : index
      %26 = vector.load %arg10[%c0_17, %c0_18] : memref<128x1xf32, #tpu.memory_space<vmem>>, vector<128x1xf32>
      %27 = arith.mulf %6, %6 : vector<128x256xf32>
      %cst_19 = arith.constant dense<0.000000e+00> : vector<128xf32>
      %28 = vector.multi_reduction <add>, %27, %cst_19 [1] : vector<128x256xf32> to vector<128xf32>
      %29 = vector.shape_cast %28 : vector<128xf32> to vector<128x1xf32>
      %30 = arith.addf %26, %29 : vector<128x1xf32>
      %c0_20 = arith.constant 0 : index
      %c0_21 = arith.constant 0 : index
      %31 = vector.load %arg10[%c0_20, %c0_21] : memref<128x1xf32, #tpu.memory_space<vmem>>, vector<128x1xf32>
      tpu.vector_store %arg10[%c0_20, %c0_21], %30 {strides = array<i32>} : memref<128x1xf32, #tpu.memory_space<vmem>>, vector<128x1xf32>,
    } else {
    }
    %c1_i32 = arith.constant 1 : i32
    %14 = arith.cmpi eq, %arg0, %c1_i32 : i32
    %15 = arith.andi %14, %2 : i1
    %16 = arith.extui %15 : i1 to i32
    %c0_i32_9 = arith.constant 0 : i32
    %17 = arith.cmpi ne, %16, %c0_i32_9 : i32
    scf.if %17 {
      %c0_12 = arith.constant 0 : index
      %c0_13 = arith.constant 0 : index
      %21 = vector.load %arg9[%c0_12, %c0_13] : memref<128x1xf32, #tpu.memory_space<vmem>>, vector<128x1xf32>
      %cst_14 = arith.constant 0.00154320989 : f32
      %22 = vector.broadcast %cst_14 : f32 to vector<128x1xf32>
      %23 = arith.mulf %21, %22 : vector<128x1xf32>
      %c0_15 = arith.constant 0 : index
      %c0_16 = arith.constant 0 : index
      %24 = vector.load %arg10[%c0_15, %c0_16] : memref<128x1xf32, #tpu.memory_space<vmem>>, vector<128x1xf32>
      %cst_17 = arith.constant 0.00154320989 : f32
      %25 = vector.broadcast %cst_17 : f32 to vector<128x1xf32>
      %26 = arith.mulf %24, %25 : vector<128x1xf32>
      %27 = arith.mulf %23, %23 : vector<128x1xf32>
      %28 = arith.subf %26, %27 : vector<128x1xf32>
      %c0_18 = arith.constant 0 : index
      %c0_19 = arith.constant 0 : index
      %29 = vector.load %arg5[%c0_18, %c0_19] : memref<128x2xf32, #tpu.memory_space<vmem>>, vector<128x1xf32>
      %cst_20 = arith.constant 1.000000e-03 : f32
      %30 = vector.broadcast %cst_20 : f32 to vector<128x1xf32>
      %31 = arith.addf %28, %30 : vector<128x1xf32>
      %32 = math.rsqrt %31 : vector<128x1xf32>
      %33 = arith.mulf %29, %32 : vector<128x1xf32>
      %c0_21 = arith.constant 0 : index
      %c0_22 = arith.constant 0 : index
      %34 = vector.load %arg11[%c0_21, %c0_22] : memref<128x1xf32, #tpu.memory_space<vmem>>, vector<128x1xf32>
      tpu.vector_store %arg11[%c0_21, %c0_22], %33 {strides = array<i32>} : memref<128x1xf32, #tpu.memory_space<vmem>>, vector<128x1xf32>,
      %c0_23 = arith.constant 0 : index
      %c1 = arith.constant 1 : index
      %35 = vector.load %arg5[%c0_23, %c1] : memref<128x2xf32, #tpu.memory_space<vmem>>, vector<128x1xf32>
      %36 = arith.mulf %23, %33 : vector<128x1xf32>
      %37 = arith.subf %35, %36 : vector<128x1xf32>
      %c0_24 = arith.constant 0 : index
      %c0_25 = arith.constant 0 : index
      %38 = vector.load %arg12[%c0_24, %c0_25] : memref<128x1xf32, #tpu.memory_space<vmem>>, vector<128x1xf32>
      tpu.vector_store %arg12[%c0_24, %c0_25], %37 {strides = array<i32>} : memref<128x1xf32, #tpu.memory_space<vmem>>, vector<128x1xf32>,
      %cst_26 = arith.constant 0.000000e+00 : f32
      %39 = vector.broadcast %cst_26 : f32 to vector<64x1xf32>
      %c0_27 = arith.constant 0 : index
      %c0_28 = arith.constant 0 : index
      %40 = vector.load %arg13[%c0_27, %c0_28] : memref<64x1xf32, #tpu.memory_space<vmem>>, vector<64x1xf32>
      tpu.vector_store %arg13[%c0_27, %c0_28], %39 {strides = array<i32>} : memref<64x1xf32, #tpu.memory_space<vmem>>, vector<64x1xf32>,
      %cst_29 = arith.constant 0.000000e+00 : f32
      %41 = vector.broadcast %cst_29 : f32 to vector<64x1xf32>
      %c0_30 = arith.constant 0 : index
      %c0_31 = arith.constant 0 : index
      %42 = vector.load %arg14[%c0_30, %c0_31] : memref<64x1xf32, #tpu.memory_space<vmem>>, vector<64x1xf32>
      tpu.vector_store %arg14[%c0_30, %c0_31], %41 {strides = array<i32>} : memref<64x1xf32, #tpu.memory_space<vmem>>, vector<64x1xf32>,
    } else {
    }
    %c1_i32_10 = arith.constant 1 : i32
    %18 = arith.cmpi eq, %arg0, %c1_i32_10 : i32
    %19 = arith.extui %18 : i1 to i32
    %c0_i32_11 = arith.constant 0 : i32
    %20 = arith.cmpi ne, %19, %c0_i32_11 : i32
    scf.if %20 {
      %c0_12 = arith.constant 0 : index
      %c0_13 = arith.constant 0 : index
      %21 = vector.load %arg11[%c0_12, %c0_13] : memref<128x1xf32, #tpu.memory_space<vmem>>, vector<128x1xf32>
      %22 = vector.broadcast %21 : vector<128x1xf32> to vector<128x256xf32>
      %23 = arith.mulf %6, %22 : vector<128x256xf32>
      %c0_14 = arith.constant 0 : index
      %c0_15 = arith.constant 0 : index
      %24 = vector.load %arg12[%c0_14, %c0_15] : memref<128x1xf32, #tpu.memory_space<vmem>>, vector<128x1xf32>
      %25 = vector.broadcast %24 : vector<128x1xf32> to vector<128x256xf32>
      %26 = arith.addf %23, %25 : vector<128x256xf32>
      %cst_16 = arith.constant 0.000000e+00 : f32
      %27 = vector.broadcast %cst_16 : f32 to vector<128x256xf32>
      %28 = arith.maximumf %26, %27 : vector<128x256xf32>
      %c0_17 = arith.constant 0 : index
      %c0_18 = arith.constant 0 : index
      %29 = vector.load %arg6[%c0_17, %c0_18] : memref<64x128xf32, #tpu.memory_space<vmem>>, vector<64x128xf32>
      %cst_19 = arith.constant dense<0.000000e+00> : vector<64x256xf32>
      %30 = tpu.matmul %29, %28, %cst_19 {dimension_numbers = #tpu.dot_dimension_numbers<[1], [0], [0], [1], [0, 0, 1, 1], [], []>} : vector<64x128xf32>, vector<128x256xf32>, vector<64x256xf32> -> vector<64x256xf32>
      %c0_20 = arith.constant 0 : index
      %c0_21 = arith.constant 0 : index
      %31 = vector.load %arg13[%c0_20, %c0_21] : memref<64x1xf32, #tpu.memory_space<vmem>>, vector<64x1xf32>
      %cst_22 = arith.constant dense<0.000000e+00> : vector<64xf32>
      %32 = vector.multi_reduction <add>, %30, %cst_22 [1] : vector<64x256xf32> to vector<64xf32>
      %33 = vector.shape_cast %32 : vector<64xf32> to vector<64x1xf32>
      %34 = arith.addf %31, %33 : vector<64x1xf32>
      %c0_23 = arith.constant 0 : index
      %c0_24 = arith.constant 0 : index
      %35 = vector.load %arg13[%c0_23, %c0_24] : memref<64x1xf32, #tpu.memory_space<vmem>>, vector<64x1xf32>
      tpu.vector_store %arg13[%c0_23, %c0_24], %34 {strides = array<i32>} : memref<64x1xf32, #tpu.memory_space<vmem>>, vector<64x1xf32>,
      %c0_25 = arith.constant 0 : index
      %c0_26 = arith.constant 0 : index
      %36 = vector.load %arg14[%c0_25, %c0_26] : memref<64x1xf32, #tpu.memory_space<vmem>>, vector<64x1xf32>
      %37 = arith.mulf %30, %30 : vector<64x256xf32>
      %cst_27 = arith.constant dense<0.000000e+00> : vector<64xf32>
      %38 = vector.multi_reduction <add>, %37, %cst_27 [1] : vector<64x256xf32> to vector<64xf32>
      %39 = vector.shape_cast %38 : vector<64xf32> to vector<64x1xf32>
      %40 = arith.addf %36, %39 : vector<64x1xf32>
      %c0_28 = arith.constant 0 : index
      %c0_29 = arith.constant 0 : index
      %41 = vector.load %arg14[%c0_28, %c0_29] : memref<64x1xf32, #tpu.memory_space<vmem>>, vector<64x1xf32>
      tpu.vector_store %arg14[%c0_28, %c0_29], %40 {strides = array<i32>} : memref<64x1xf32, #tpu.memory_space<vmem>>, vector<64x1xf32>,
      %c0_30 = arith.constant 0 : index
      %c0_31 = arith.constant 0 : index
      %c0_32 = arith.constant 0 : index
      %42 = vector.load %arg7[%c0_30, %c0_31, %c0_32] : memref<1x64x256xf32, #tpu.memory_space<vmem>>, vector<1x64x256xf32>
      %43 = vector.shape_cast %42 : vector<1x64x256xf32> to vector<64x256xf32>
      %44 = vector.shape_cast %30 : vector<64x256xf32> to vector<1x64x256xf32>
      tpu.vector_store %arg7[%c0_30, %c0_31, %c0_32], %44 {strides = array<i32>} : memref<1x64x256xf32, #tpu.memory_space<vmem>>, vector<1x64x256xf32>,
      %c0_33 = arith.constant 0 : index
      %c0_34 = arith.constant 0 : index
      %45 = vector.load %arg13[%c0_33, %c0_34] : memref<64x1xf32, #tpu.memory_space<vmem>>, vector<64x1xf32>
      %c0_35 = arith.constant 0 : index
      %c0_36 = arith.constant 0 : index
      %46 = vector.load %arg8[%c0_35, %c0_36] : memref<64x2xf32, #tpu.memory_space<vmem>>, vector<64x1xf32>
      tpu.vector_store %arg8[%c0_35, %c0_36], %45 {strides = array<i32>} : memref<64x2xf32, #tpu.memory_space<vmem>>, vector<64x1xf32>,
      %c0_37 = arith.constant 0 : index
      %c0_38 = arith.constant 0 : index
      %47 = vector.load %arg14[%c0_37, %c0_38] : memref<64x1xf32, #tpu.memory_space<vmem>>, vector<64x1xf32>
      %c0_39 = arith.constant 0 : index
      %c1 = arith.constant 1 : index
      %48 = vector.load %arg8[%c0_39, %c1] : memref<64x2xf32, #tpu.memory_space<vmem>>, vector<64x1xf32>
      tpu.vector_store %arg8[%c0_39, %c1], %47 {strides = array<i32>} : memref<64x2xf32, #tpu.memory_space<vmem>>, vector<64x1xf32>,
    } else {
    }
    return
  }
  func.func @transform_0(%arg0: i32, %arg1: i32, %arg2: i32) -> (i32, i32, i32) {
    %c0_i32 = arith.constant 0 : i32
    %c0_i32_0 = arith.constant 0 : i32
    return %arg1, %c0_i32, %arg2 : i32, i32, i32
  }
  func.func @transform_1(%arg0: i32, %arg1: i32, %arg2: i32) -> (i32, i32) {
    %c0_i32 = arith.constant 0 : i32
    %c0_i32_0 = arith.constant 0 : i32
    %c0_i32_1 = arith.constant 0 : i32
    return %c0_i32, %c0_i32_0 : i32, i32
  }
  func.func @transform_2(%arg0: i32, %arg1: i32, %arg2: i32) -> (i32, i32) {
    %c0_i32 = arith.constant 0 : i32
    %c0_i32_0 = arith.constant 0 : i32
    %c0_i32_1 = arith.constant 0 : i32
    return %c0_i32, %c0_i32_0 : i32, i32
  }
  func.func @transform_3(%arg0: i32, %arg1: i32, %arg2: i32) -> (i32, i32) {
    %c0_i32 = arith.constant 0 : i32
    %c0_i32_0 = arith.constant 0 : i32
    %c0_i32_1 = arith.constant 0 : i32
    return %c0_i32, %c0_i32_0 : i32, i32
  }
  func.func @transform_4(%arg0: i32, %arg1: i32, %arg2: i32) -> (i32, i32, i32) {
    %0 = arith.muli %arg1, %arg0 : i32
    %1 = arith.muli %arg2, %arg0 : i32
    %c0_i32 = arith.constant 0 : i32
    %c0_i32_0 = arith.constant 0 : i32
    return %0, %c0_i32, %1 : i32, i32, i32
  }
  func.func @transform_5(%arg0: i32, %arg1: i32, %arg2: i32) -> (i32, i32) {
    %c0_i32 = arith.constant 0 : i32
    %c0_i32_0 = arith.constant 0 : i32
    %c0_i32_1 = arith.constant 0 : i32
    return %c0_i32, %c0_i32_0 : i32, i32
  }
}

module attributes {stable_mosaic.version = 11 : i64} {
  func.func @kernel(%arg0: i32, %arg1: i32, %arg2: memref<1x64x256xf32, #tpu.memory_space<vmem>>, %arg3: memref<64x2xf32, #tpu.memory_space<vmem>>, %arg4: memref<32x64xf32, #tpu.memory_space<vmem>>, %arg5: memref<32x2xf32, #tpu.memory_space<vmem>>, %arg6: memref<1x32x256xf32, #tpu.memory_space<vmem>>) attributes {dimension_semantics = [#tpu.dimension_semantics<parallel>, #tpu.dimension_semantics<parallel>], iteration_bounds = array<i64: 2, 1>, scalar_prefetch = 0 : i64, scratch_operands = 0 : i64, tpu.core_type = #tpu.core_type<tc>, window_params = [{transform_indices = @transform_0, window_bounds = array<i64: 1, 64, 256>}, {pipeline_mode = #tpu.pipeline_mode<synchronous>, transform_indices = @transform_1, window_bounds = array<i64: 64, 2>}, {pipeline_mode = #tpu.pipeline_mode<synchronous>, transform_indices = @transform_2, window_bounds = array<i64: 32, 64>}, {pipeline_mode = #tpu.pipeline_mode<synchronous>, transform_indices = @transform_3, window_bounds = array<i64: 32, 2>}, {transform_indices = @transform_4, window_bounds = array<i64: 1, 32, 256>}]} {
    %c0 = arith.constant 0 : index
    %c0_0 = arith.constant 0 : index
    %c0_1 = arith.constant 0 : index
    %0 = vector.load %arg2[%c0, %c0_0, %c0_1] : memref<1x64x256xf32, #tpu.memory_space<vmem>>, vector<1x64x256xf32>
    %1 = vector.shape_cast %0 : vector<1x64x256xf32> to vector<64x256xf32>
    %c0_2 = arith.constant 0 : index
    %c0_3 = arith.constant 0 : index
    %2 = vector.load %arg3[%c0_2, %c0_3] : memref<64x2xf32, #tpu.memory_space<vmem>>, vector<64x1xf32>
    %3 = vector.broadcast %2 : vector<64x1xf32> to vector<64x256xf32>
    %4 = arith.mulf %1, %3 : vector<64x256xf32>
    %c0_4 = arith.constant 0 : index
    %c1 = arith.constant 1 : index
    %5 = vector.load %arg3[%c0_4, %c1] : memref<64x2xf32, #tpu.memory_space<vmem>>, vector<64x1xf32>
    %6 = vector.broadcast %5 : vector<64x1xf32> to vector<64x256xf32>
    %7 = arith.addf %4, %6 : vector<64x256xf32>
    %cst = arith.constant 0.000000e+00 : f32
    %8 = vector.broadcast %cst : f32 to vector<64x256xf32>
    %9 = arith.maximumf %7, %8 : vector<64x256xf32>
    %c0_5 = arith.constant 0 : index
    %c0_6 = arith.constant 0 : index
    %10 = vector.load %arg4[%c0_5, %c0_6] : memref<32x64xf32, #tpu.memory_space<vmem>>, vector<32x64xf32>
    %cst_7 = arith.constant dense<0.000000e+00> : vector<32x256xf32>
    %11 = tpu.matmul %10, %9, %cst_7 {dimension_numbers = #tpu.dot_dimension_numbers<[1], [0], [0], [1], [0, 0, 1, 1], [], []>} : vector<32x64xf32>, vector<64x256xf32>, vector<32x256xf32> -> vector<32x256xf32>
    %c0_8 = arith.constant 0 : index
    %c0_9 = arith.constant 0 : index
    %12 = vector.load %arg5[%c0_8, %c0_9] : memref<32x2xf32, #tpu.memory_space<vmem>>, vector<32x1xf32>
    %13 = vector.broadcast %12 : vector<32x1xf32> to vector<32x256xf32>
    %14 = arith.addf %11, %13 : vector<32x256xf32>
    %cst_10 = arith.constant 0.000000e+00 : f32
    %15 = vector.broadcast %cst_10 : f32 to vector<32x256xf32>
    %16 = arith.minimumf %14, %15 : vector<32x256xf32>
    %17 = math.absf %14 : vector<32x256xf32>
    %cst_11 = arith.constant 0.000000e+00 : f32
    %18 = vector.broadcast %cst_11 : f32 to vector<32x256xf32>
    %19 = arith.subf %18, %17 : vector<32x256xf32>
    %20 = math.exp %19 : vector<32x256xf32>
    %cst_12 = arith.constant 1.000000e+00 : f32
    %21 = vector.broadcast %cst_12 : f32 to vector<32x256xf32>
    %22 = arith.addf %21, %20 : vector<32x256xf32>
    %23 = math.log %22 : vector<32x256xf32>
    %24 = arith.subf %16, %23 : vector<32x256xf32>
    %c0_13 = arith.constant 0 : index
    %c1_14 = arith.constant 1 : index
    %25 = vector.load %arg5[%c0_13, %c1_14] : memref<32x2xf32, #tpu.memory_space<vmem>>, vector<32x1xf32>
    %26 = vector.broadcast %25 : vector<32x1xf32> to vector<32x256xf32>
    %27 = arith.subf %24, %26 : vector<32x256xf32>
    %c0_15 = arith.constant 0 : index
    %c0_16 = arith.constant 0 : index
    %c0_17 = arith.constant 0 : index
    %28 = vector.load %arg6[%c0_15, %c0_16, %c0_17] : memref<1x32x256xf32, #tpu.memory_space<vmem>>, vector<1x32x256xf32>
    %29 = vector.shape_cast %28 : vector<1x32x256xf32> to vector<32x256xf32>
    %30 = vector.shape_cast %27 : vector<32x256xf32> to vector<1x32x256xf32>
    tpu.vector_store %arg6[%c0_15, %c0_16, %c0_17], %30 {strides = array<i32>} : memref<1x32x256xf32, #tpu.memory_space<vmem>>, vector<1x32x256xf32>,
    return
  }
  func.func @transform_0(%arg0: i32, %arg1: i32) -> (i32, i32, i32) {
    %c0_i32 = arith.constant 0 : i32
    %c0_i32_0 = arith.constant 0 : i32
    return %arg0, %c0_i32, %arg1 : i32, i32, i32
  }
  func.func @transform_1(%arg0: i32, %arg1: i32) -> (i32, i32) {
    %c0_i32 = arith.constant 0 : i32
    %c0_i32_0 = arith.constant 0 : i32
    %c0_i32_1 = arith.constant 0 : i32
    return %c0_i32, %c0_i32_0 : i32, i32
  }
  func.func @transform_2(%arg0: i32, %arg1: i32) -> (i32, i32) {
    %c0_i32 = arith.constant 0 : i32
    %c0_i32_0 = arith.constant 0 : i32
    %c0_i32_1 = arith.constant 0 : i32
    return %c0_i32, %c0_i32_0 : i32, i32
  }
  func.func @transform_3(%arg0: i32, %arg1: i32) -> (i32, i32) {
    %c0_i32 = arith.constant 0 : i32
    %c0_i32_0 = arith.constant 0 : i32
    %c0_i32_1 = arith.constant 0 : i32
    return %c0_i32, %c0_i32_0 : i32, i32
  }
  func.func @transform_4(%arg0: i32, %arg1: i32) -> (i32, i32, i32) {
    %c0_i32 = arith.constant 0 : i32
    %c0_i32_0 = arith.constant 0 : i32
    return %arg0, %c0_i32, %arg1 : i32, i32, i32
  }
}

</mosaic_0001>

<llo_original>
// kernel: decoder_track_a_forward.3
$region0: #{decoder_track_a_forward.3}
  #allocation0 [shape = 'u32[]', space=smem, size = 0x4, offset = 0x4, fixed_abs, tag = 'smem constant byte address 0x4 - core index']
  #allocation1 [shape = 'u32[144,128]{1,0:T(1,128)}', space=vmem, size = 0x12000, scoped, tag = 'internal scratch']
  %s0 = inlined_call_operand.vmem [shape: f32[2,64,256], index: 0, kind: input, shape index: {}]
  %s1 = inlined_call_operand.vmem [shape: f32[64,2], index: 1, kind: input, shape index: {}]
  %s2 = inlined_call_operand.vmem [shape: f32[32,64], index: 2, kind: input, shape index: {}]
  %s3 = inlined_call_operand.vmem [shape: f32[32,2], index: 3, kind: input, shape index: {}]
  %s4 = inlined_call_operand.vmem [shape: f32[2,32,256], index: 4, kind: output, shape index: {}]
  %s5 = sld [smem:[#allocation0]]
  $region49: #{decoder_track_a_forward.3} parent=0
    _
  %s7 = ssub.s32 1, %s5
  %s8 = scalar_select 0, %s7, %s5
  loop: start=0, step=1, limit=4
  $region2: #{decoder_track_a_forward.3} parent=0 // loop_pre_header
    _
  $region3: #{decoder_track_a_forward.3} parent=0 // loop_header
    %s10 = sphi 0, %s14
    %p11 = scmp.ge.s32.totalorder %s10, 4
    %s17 = sphi 0, %s29
    %s18 = sphi 0, %s25
    %s19 = sphi 0, %s17
    %s20 = sphi 0, %s18
    %s21 = sphi 0, %s19
    %s22 = sphi 0, %s20
    %s34 = sphi 0, %s36
    %s37 = sphi 0, %s34
    %s38 = sphi 0, %s37
    %s54 = sphi 0, %s38
    %s58 = sphi 0, %s58
    %s60 = sphi 0, %s58
    %s61 = sphi 0, %s60
    %s75 = sphi 0, %s61
    %s79 = sphi 0, %s79
    %s81 = sphi 0, %s79
    %s82 = sphi 0, %s81
    %s96 = sphi 0, %s82
    %s100 = sphi 0, %s100
    %s102 = sphi 0, %s100
    %s103 = sphi 0, %s102
    %s117 = sphi 0, %s103
    %s125 = sphi 0, %s127
    %s128 = sphi 0, %s125
    %s129 = sphi 0, %s128
    %s145 = sphi 0, %s129
  $region4: #{decoder_track_a_forward.3} parent=0 // loop_header_branch
    %13 = sbr.rel (%p11) target = $region8
  $region5: #{decoder_track_a_forward.3} parent=0 // loop_body
    %s15 = ssub.s32 %s10, 1
    %s16 = ssub.s32 %s10, 2
    %s23 = sadd.s32 1, %s18
    %p24 = scmp.ge.s32.totalorder %s23, 1
    %s25 = scalar_select %p24, 0, %s23
    %s26 = sadd.s32 1, %s17
    %s27 = scalar_select %p24, %s26, %s17
    %p28 = scmp.ge.s32.totalorder %s27, 2
    %s29 = scalar_select %p28, 0, %s27
    %s30 = ssub.s32 %s17, %s29
    %s31 = ssub.s32 %s18, %s25
    %s32 = sor.u32 %s30, %s31
    %p33 = scmp.eq.s32.totalorder %s32, 0
    %s35 = sadd.s32 %s34, 1
    %s36 = scalar_select %p33, %s34, %s35
    %p39 = pneg %p33
    %p40 = scmp.eq.s32.totalorder %s10, 1
    %p41 = por %p39, %p40
    %p42 = scmp.ne.s32.totalorder %s34, %s37
    %p43 = scmp.eq.s32.totalorder %s10, 0
    %p44 = por %p42, %p43
    %p45 = scmp.ne.s32.totalorder %s34, %s37
    %p46 = scmp.eq.s32.totalorder %s15, 1
    %p47 = por %p45, %p46
    %p48 = scmp.ne.s32.totalorder %s37, %s38
    %p49 = scmp.eq.s32.totalorder %s15, 0
    %p50 = por %p48, %p49
    %p51 = scmp.ne.s32.totalorder %s37, %s38
    %p52 = scmp.eq.s32.totalorder %s16, 1
    %p53 = por %p51, %p52
    %p55 = scmp.ne.s32.totalorder %s38, %s54
    %p56 = scmp.eq.s32.totalorder %s16, 0
    %p57 = por %p55, %p56
    %s59 = sadd.s32 %s58, 1
    %p62 = scmp.eq.s32.totalorder %s10, 1
    %p63 = scmp.ne.s32.totalorder %s58, %s60
    %p64 = scmp.eq.s32.totalorder %s10, 0
    %p65 = por %p63, %p64
    %p66 = scmp.ne.s32.totalorder %s58, %s60
    %p67 = scmp.eq.s32.totalorder %s15, 1
    %p68 = por %p66, %p67
    %p69 = scmp.ne.s32.totalorder %s60, %s61
    %p70 = scmp.eq.s32.totalorder %s15, 0
    %p71 = por %p69, %p70
    %p72 = scmp.ne.s32.totalorder %s60, %s61
    %p73 = scmp.eq.s32.totalorder %s16, 1
    %p74 = por %p72, %p73
    %p76 = scmp.ne.s32.totalorder %s61, %s75
    %p77 = scmp.eq.s32.totalorder %s16, 0
    %p78 = por %p76, %p77
    %s80 = sadd.s32 %s79, 1
    %p83 = scmp.eq.s32.totalorder %s10, 1
    %p84 = scmp.ne.s32.totalorder %s79, %s81
    %p85 = scmp.eq.s32.totalorder %s10, 0
    %p86 = por %p84, %p85
    %p87 = scmp.ne.s32.totalorder %s79, %s81
    %p88 = scmp.eq.s32.totalorder %s15, 1
    %p89 = por %p87, %p88
    %p90 = scmp.ne.s32.totalorder %s81, %s82
    %p91 = scmp.eq.s32.totalorder %s15, 0
    %p92 = por %p90, %p91
    %p93 = scmp.ne.s32.totalorder %s81, %s82
    %p94 = scmp.eq.s32.totalorder %s16, 1
    %p95 = por %p93, %p94
    %p97 = scmp.ne.s32.totalorder %s82, %s96
    %p98 = scmp.eq.s32.totalorder %s16, 0
    %p99 = por %p97, %p98
    %s101 = sadd.s32 %s100, 1
    %p104 = scmp.eq.s32.totalorder %s10, 1
    %p105 = scmp.ne.s32.totalorder %s100, %s102
    %p106 = scmp.eq.s32.totalorder %s10, 0
    %p107 = por %p105, %p106
    %p108 = scmp.ne.s32.totalorder %s100, %s102
    %p109 = scmp.eq.s32.totalorder %s15, 1
    %p110 = por %p108, %p109
    %p111 = scmp.ne.s32.totalorder %s102, %s103
    %p112 = scmp.eq.s32.totalorder %s15, 0
    %p113 = por %p111, %p112
    %p114 = scmp.ne.s32.totalorder %s102, %s103
    %p115 = scmp.eq.s32.totalorder %s16, 1
    %p116 = por %p114, %p115
    %p118 = scmp.ne.s32.totalorder %s103, %s117
    %p119 = scmp.eq.s32.totalorder %s16, 0
    %p120 = por %p118, %p119
    %s121 = ssub.s32 %s17, %s29
    %s122 = ssub.s32 %s18, %s25
    %s123 = sor.u32 %s121, %s122
    %p124 = scmp.eq.s32.totalorder %s123, 0
    %s126 = sadd.s32 %s125, 1
    %s127 = scalar_select %p124, %s125, %s126
    %p130 = pneg %p124
    %p131 = scmp.eq.s32.totalorder %s10, 1
    %p132 = por %p130, %p131
    %p133 = scmp.ne.s32.totalorder %s125, %s128
    %p134 = scmp.eq.s32.totalorder %s10, 0
    %p135 = por %p133, %p134
    %p136 = scmp.ne.s32.totalorder %s125, %s128
    %p137 = scmp.eq.s32.totalorder %s15, 1
    %p138 = por %p136, %p137
    %p139 = scmp.ne.s32.totalorder %s128, %s129
    %p140 = scmp.eq.s32.totalorder %s15, 0
    %p141 = por %p139, %p140
    %p142 = scmp.ne.s32.totalorder %s128, %s129
    %p143 = scmp.eq.s32.totalorder %s16, 1
    %p144 = por %p142, %p143
    %p146 = scmp.ne.s32.totalorder %s129, %s145
    %p147 = scmp.eq.s32.totalorder %s16, 0
    %p148 = por %p146, %p147
    %p149 = scmp.le.s32.totalorder 1, %s10
    %p150 = scmp.lt.s32.totalorder %s10, 3
    %p151 = pnand %p149, %p150
    %p152 = pneg %p151
    // Predicated region
    $region9: #{decoder_track_a_forward.3} parent=5 // pred_check
      _
    $region10: #{decoder_track_a_forward.3} parent=5 // pred_check_branch
      %154 = sbr.rel (%p151) target = $region12
    $region11: #{decoder_track_a_forward.3} parent=5 // pred_region
      %s155 = ssub.s32 %s10, 1
      // Predicated region
      $region13: #{decoder_track_a_forward.3} parent=11 // pred_check
        %p156 = pneg %p71
      $region14: #{decoder_track_a_forward.3} parent=11 // pred_check_branch
        %158 = sbr.rel (%p156) target = $region16
      $region15: #{decoder_track_a_forward.3} parent=11 // pred_region
        _
      $region16: #{decoder_track_a_forward.3} parent=11 // pred_fallthru
        _
      // Predicated region
      $region17: #{decoder_track_a_forward.3} parent=11 // pred_check
        %p159 = pneg %p92
      $region18: #{decoder_track_a_forward.3} parent=11 // pred_check_branch
        %161 = sbr.rel (%p159) target = $region20
      $region19: #{decoder_track_a_forward.3} parent=11 // pred_region
        _
      $region20: #{decoder_track_a_forward.3} parent=11 // pred_fallthru
        _
      // Predicated region
      $region21: #{decoder_track_a_forward.3} parent=11 // pred_check
        %p162 = pneg %p113
      $region22: #{decoder_track_a_forward.3} parent=11 // pred_check_branch
        %164 = sbr.rel (%p162) target = $region24
      $region23: #{decoder_track_a_forward.3} parent=11 // pred_region
        _
      $region24: #{decoder_track_a_forward.3} parent=11 // pred_fallthru
        _
    $region12: #{decoder_track_a_forward.3} parent=5 // pred_fallthru
      _
    %p165 = scmp.lt.s32.totalorder %s10, 2
    // Predicated region
    $region25: #{decoder_track_a_forward.3} parent=5 // pred_check
      %p166 = pneg %p165
    $region26: #{decoder_track_a_forward.3} parent=5 // pred_check_branch
      %168 = sbr.rel (%p166) target = $region28
    $region27: #{decoder_track_a_forward.3} parent=5 // pred_region
      // Predicated region
      $region29: #{decoder_track_a_forward.3} parent=27 // pred_check
        %p169 = pneg %p44
      $region30: #{decoder_track_a_forward.3} parent=27 // pred_check_branch
        %171 = sbr.rel (%p169) target = $region32
      $region31: #{decoder_track_a_forward.3} parent=27 // pred_region
        %s172 = smul.u32 2, %s18
        %p173 = scmp.lt.s32.totalorder %s17, 1
        %s174 = scalar_select %p173, %s17, 1
        %p175 = scmp.lt.s32.totalorder %s172, 1
        %s176 = scalar_select %p175, %s172, 1
        %s177 = smul.addr %s174, 16
        %s178 = sadd.s32 %s176, %s177
        %s179 = smul.addr %s178, 8
        %s180 = scalar_lea.vmem %s0, %s179
        %s181 = smul.u32 2, %s18
      $region32: #{decoder_track_a_forward.3} parent=27 // pred_fallthru
        _
    $region28: #{decoder_track_a_forward.3} parent=5 // pred_fallthru
      _
    %p182 = scmp.le.s32.totalorder 1, %s10
    %p183 = scmp.lt.s32.totalorder %s10, 3
    %p184 = pnand %p182, %p183
    %p185 = pneg %p184
    // Predicated region
    $region33: #{decoder_track_a_forward.3} parent=5 // pred_check
      _
    $region34: #{decoder_track_a_forward.3} parent=5 // pred_check_branch
      %187 = sbr.rel (%p184) target = $region36
    $region35: #{decoder_track_a_forward.3} parent=5 // pred_region
      %s188 = ssub.s32 %s10, 1
      %s189 = smul.u32 2, %s20
      %p190 = scmp.lt.s32.totalorder %s19, 1
      %s191 = scalar_select %p190, %s19, 1
      %p192 = scmp.lt.s32.totalorder %s189, 1
      %s193 = scalar_select %p192, %s189, 1
      %s194 = smul.addr %s191, 16
      %s195 = sadd.s32 %s193, %s194
      %s196 = smul.addr %s195, 8
      %s197 = scalar_lea.vmem %s0, %s196
      %p198 = pneg %p50
      %p199 = pneg %p47
      %p200 = pneg %p71
      %p201 = pneg %p68
      %p202 = pneg %p92
      %p203 = pneg %p89
      %p204 = pneg %p113
      %p205 = pneg %p110
      %p206 = pneg %p141
      %p207 = pneg %p138
      %s208 = smul.u32 2, %s20
      %p209 = scmp.lt.s32.totalorder %s19, 1
      %s210 = scalar_select %p209, %s19, 1
      %p211 = scmp.lt.s32.totalorder %s208, 1
      %s212 = scalar_select %p211, %s208, 1
      %s213 = smul.addr %s210, 8
      %s214 = sadd.s32 %s212, %s213
      %s215 = smul.addr %s214, 8
      %s216 = scalar_lea.vmem %s4, %s215
      %s217 = smul.u32 2, %s20
      %p218 = scmp.lt.s32.totalorder %s19, 1
      %s219 = scalar_select %p218, %s19, 1
      %p220 = scmp.lt.s32.totalorder %s217, 1
      %s221 = scalar_select %p220, %s217, 1
      %s222 = smul.addr %s219, 16
      %s223 = sadd.s32 %s221, %s222
      %s224 = smul.addr %s223, 8
      %s225 = scalar_lea.vmem %s0, %s224
      %s226 = smul.u32 2, %s20
      %s227 = smul.u32 2, %s20
      %p228 = scmp.lt.s32.totalorder %s19, 1
      %s229 = scalar_select %p228, %s19, 1
      %p230 = scmp.lt.s32.totalorder %s227, 1
      %s231 = scalar_select %p230, %s227, 1
      %s232 = smul.addr %s229, 8
      %s233 = sadd.s32 %s231, %s232
      %s234 = smul.addr %s233, 8
      %s235 = scalar_lea.vmem %s4, %s234
      %s236 = smul.u32 2, %s20
      %v237 = vld [vmem:[%s225] sm:$0xff]
      %v238 = vld [vmem:[%s225 + $0x8] sm:$0xff]
      %v239 = vld [vmem:[%s225 + $0x10] sm:$0xff]
      %v240 = vld [vmem:[%s225 + $0x18] sm:$0xff]
      %v241 = vld [vmem:[%s225 + $0x20] sm:$0xff]
      %v242 = vld [vmem:[%s225 + $0x28] sm:$0xff]
      %v243 = vld [vmem:[%s225 + $0x30] sm:$0xff]
      %v244 = vld [vmem:[%s225 + $0x38] sm:$0xff]
      %v245 = vld [vmem:[%s225 + $0x40] sm:$0xff]
      %v246 = vld [vmem:[%s225 + $0x48] sm:$0xff]
      %v247 = vld [vmem:[%s225 + $0x50] sm:$0xff]
      %v248 = vld [vmem:[%s225 + $0x58] sm:$0xff]
      %v249 = vld [vmem:[%s225 + $0x60] sm:$0xff]
      %v250 = vld [vmem:[%s225 + $0x68] sm:$0xff]
      %v251 = vld [vmem:[%s225 + $0x70] sm:$0xff]
      %v252 = vld [vmem:[%s225 + $0x78] sm:$0xff]
      %v253 = vld [vmem:[%s1] sm:$0xff]
      %v254 = vld [vmem:[%s1 + $0x8] sm:$0xff]
      %v255 = vld [vmem:[%s1 + $0x10] sm:$0xff]
      %v256 = vld [vmem:[%s1 + $0x18] sm:$0xff]
      %v257 = vld [vmem:[%s1 + $0x20] sm:$0xff]
      %v258 = vld [vmem:[%s1 + $0x28] sm:$0xff]
      %v259 = vld [vmem:[%s1 + $0x30] sm:$0xff]
      %v260 = vld [vmem:[%s1 + $0x38] sm:$0xff]
      %262 = vset.pattern.permute.xlu0 0
      %263 = vperm.xlu0 %262, %v253
      %v264 = vpop.permute.xlu0 %263
      %267 = vset.pattern.permute.xlu0 0
      %268 = vperm.xlu0 %267, %v254
      %v269 = vpop.permute.xlu0 %268
      %272 = vset.pattern.permute.xlu0 0
      %273 = vperm.xlu0 %272, %v255
      %v274 = vpop.permute.xlu0 %273
      %277 = vset.pattern.permute.xlu0 0
      %278 = vperm.xlu0 %277, %v256
      %v279 = vpop.permute.xlu0 %278
      %282 = vset.pattern.permute.xlu0 0
      %283 = vperm.xlu0 %282, %v257
      %v284 = vpop.permute.xlu0 %283
      %287 = vset.pattern.permute.xlu0 0
      %288 = vperm.xlu0 %287, %v258
      %v289 = vpop.permute.xlu0 %288
      %292 = vset.pattern.permute.xlu0 0
      %293 = vperm.xlu0 %292, %v259
      %v294 = vpop.permute.xlu0 %293
      %297 = vset.pattern.permute.xlu0 0
      %298 = vperm.xlu0 %297, %v260
      %v299 = vpop.permute.xlu0 %298
      %v301 = vmul.f32 %v237, %v264
      %v302 = vmul.f32 %v238, %v264
      %v303 = vmul.f32 %v239, %v269
      %v304 = vmul.f32 %v240, %v269
      %v305 = vmul.f32 %v241, %v274
      %v306 = vmul.f32 %v242, %v274
      %v307 = vmul.f32 %v243, %v279
      %v308 = vmul.f32 %v244, %v279
      %v309 = vmul.f32 %v245, %v284
      %v310 = vmul.f32 %v246, %v284
      %v311 = vmul.f32 %v247, %v289
      %v312 = vmul.f32 %v248, %v289
      %v313 = vmul.f32 %v249, %v294
      %v314 = vmul.f32 %v250, %v294
      %v315 = vmul.f32 %v251, %v299
      %v316 = vmul.f32 %v252, %v299
      %317 = vset.pattern.permute.xlu0 1
      %318 = vperm.xlu0 %317, %v253
      %v319 = vpop.permute.xlu0 %318
      %321 = vset.pattern.permute.xlu0 1
      %322 = vperm.xlu0 %321, %v254
      %v323 = vpop.permute.xlu0 %322
      %325 = vset.pattern.permute.xlu0 1
      %326 = vperm.xlu0 %325, %v255
      %v327 = vpop.permute.xlu0 %326
      %329 = vset.pattern.permute.xlu0 1
      %330 = vperm.xlu0 %329, %v256
      %v331 = vpop.permute.xlu0 %330
      %333 = vset.pattern.permute.xlu0 1
      %334 = vperm.xlu0 %333, %v257
      %v335 = vpop.permute.xlu0 %334
      %337 = vset.pattern.permute.xlu0 1
      %338 = vperm.xlu0 %337, %v258
      %v339 = vpop.permute.xlu0 %338
      %341 = vset.pattern.permute.xlu0 1
      %342 = vperm.xlu0 %341, %v259
      %v343 = vpop.permute.xlu0 %342
      %345 = vset.pattern.permute.xlu0 1
      %346 = vperm.xlu0 %345, %v260
      %v347 = vpop.permute.xlu0 %346
      %v349 = vadd.f32 %v301, %v319
      %v350 = vadd.f32 %v302, %v319
      %v351 = vadd.f32 %v303, %v323
      %v352 = vadd.f32 %v304, %v323
      %v353 = vadd.f32 %v305, %v327
      %v354 = vadd.f32 %v306, %v327
      %v355 = vadd.f32 %v307, %v331
      %v356 = vadd.f32 %v308, %v331
      %v357 = vadd.f32 %v309, %v335
      %v358 = vadd.f32 %v310, %v335
      %v359 = vadd.f32 %v311, %v339
      %v360 = vadd.f32 %v312, %v339
      %v361 = vadd.f32 %v313, %v343
      %v362 = vadd.f32 %v314, %v343
      %v363 = vadd.f32 %v315, %v347
      %v364 = vadd.f32 %v316, %v347
      %v365 = vmax.f32 %v349, 0.0
      %v366 = vmax.f32 %v350, 0.0
      %v367 = vmax.f32 %v351, 0.0
      %v368 = vmax.f32 %v352, 0.0
      %v369 = vmax.f32 %v353, 0.0
      %v370 = vmax.f32 %v354, 0.0
      %v371 = vmax.f32 %v355, 0.0
      %v372 = vmax.f32 %v356, 0.0
      %v373 = vmax.f32 %v357, 0.0
      %v374 = vmax.f32 %v358, 0.0
      %v375 = vmax.f32 %v359, 0.0
      %v376 = vmax.f32 %v360, 0.0
      %v377 = vmax.f32 %v361, 0.0
      %v378 = vmax.f32 %v362, 0.0
      %v379 = vmax.f32 %v363, 0.0
      %v380 = vmax.f32 %v364, 0.0
      %v381 = vld [vmem:[%s2] sm:$0xff]
      %v382 = vld [vmem:[%s2 + $0x8] sm:$0xff]
      %v383 = vld [vmem:[%s2 + $0x10] sm:$0xff]
      %v384 = vld [vmem:[%s2 + $0x18] sm:$0xff]
      %v385 = vld [vmem:[%s3] sm:$0xff]
      %v386 = vld [vmem:[%s3 + $0x8] sm:$0xff]
      %v387 = vld [vmem:[%s3 + $0x10] sm:$0xff]
      %v388 = vld [vmem:[%s3 + $0x18] sm:$0xff]
      %390 = vset.pattern.permute.xlu0 0
      %391 = vperm.xlu0 %390, %v385
      %v392 = vpop.permute.xlu0 %391
      %395 = vset.pattern.permute.xlu0 0
      %396 = vperm.xlu0 %395, %v386
      %v397 = vpop.permute.xlu0 %396
      %400 = vset.pattern.permute.xlu0 0
      %401 = vperm.xlu0 %400, %v387
      %v402 = vpop.permute.xlu0 %401
      %405 = vset.pattern.permute.xlu0 0
      %406 = vperm.xlu0 %405, %v388
      %v407 = vpop.permute.xlu0 %406
      %vm409 = vcmask 523264
      %v411 = vsel %vm409, %v381, 0
      %v414 = vsel %vm409, %v382, 0
      %v417 = vsel %vm409, %v383, 0
      %v420 = vsel %vm409, %v384, 0
      %422 = vmatprep.subr.mxu0 %v366
      %423 = vmatpush1.msra.mxu0 %v365
      %424 = vmatprep.subr.mxu0 %v368
      %425 = vmatpush1.msra.mxu0 %v367
      %426 = vmatprep.subr.mxu0 %v370
      %427 = vmatpush1.msra.mxu0 %v369
      %428 = vmatprep.subr.mxu0 %v372
      %429 = vmatpush1.msra.mxu0 %v371
      %430 = vmatprep.subr.mxu0 %v374
      %431 = vmatpush1.msra.mxu0 %v373
      %432 = vmatprep.subr.mxu0 %v376
      %433 = vmatpush1.msra.mxu0 %v375
      %434 = vmatprep.subr.mxu0 %v378
      %435 = vmatpush1.msra.mxu0 %v377
      %436 = vmatprep.subr.mxu0 %v380
      %437 = vmatpush1.msra.mxu0 %v379
      %438 = vmatprep.subr.mxu0 0.0
      %439 = vmatpush1.msra.mxu0 0.0
      %440 = vmatprep.subr.mxu0 0.0
      %441 = vmatpush1.msra.mxu0 0.0
      %442 = vmatprep.subr.mxu0 0.0
      %443 = vmatpush1.msra.mxu0 0.0
      %444 = vmatprep.subr.mxu0 0.0
      %445 = vmatpush1.msra.mxu0 0.0
      %446 = vmatprep.subr.mxu0 0.0
      %447 = vmatpush1.msra.mxu0 0.0
      %448 = vmatprep.subr.mxu0 0.0
      %449 = vmatpush1.msra.mxu0 0.0
      %450 = vmatprep.subr.mxu0 0.0
      %451 = vmatpush1.msra.mxu0 0.0
      %452 = vmatprep.subr.mxu0 0.0
      %453 = vmatpush1.msra.mxu0 0.0
      %454 = vmatprep.subr.mxu0 0.0
      %455 = vmatpush1.msra.mxu0 0.0
      %456 = vmatprep.subr.mxu0 0.0
      %457 = vmatpush1.msra.mxu0 0.0
      %458 = vmatprep.subr.mxu0 0.0
      %459 = vmatpush1.msra.mxu0 0.0
      %460 = vmatprep.subr.mxu0 0.0
      %461 = vmatpush1.msra.mxu0 0.0
      %462 = vmatprep.subr.mxu0 0.0
      %463 = vmatpush1.msra.mxu0 0.0
      %464 = vmatprep.subr.mxu0 0.0
      %465 = vmatpush1.msra.mxu0 0.0
      %466 = vmatprep.subr.mxu0 0.0
      %467 = vmatpush1.msra.mxu0 0.0
      %468 = vmatprep.subr.mxu0 0.0
      %469 = vmatpush1.msra.mxu0 0.0
      %470 = vmatprep.subr.mxu0 0.0
      %471 = vmatpush1.msra.mxu0 0.0
      %472 = vmatprep.subr.mxu0 0.0
      %473 = vmatpush1.msra.mxu0 0.0
      %474 = vmatprep.subr.mxu0 0.0
      %475 = vmatpush1.msra.mxu0 0.0
      %476 = vmatprep.subr.mxu0 0.0
      %477 = vmatpush1.msra.mxu0 0.0
      %478 = vmatprep.subr.mxu0 0.0
      %479 = vmatpush1.msra.mxu0 0.0
      %480 = vmatprep.subr.mxu0 0.0
      %481 = vmatpush1.msra.mxu0 0.0
      %482 = vmatprep.subr.mxu0 0.0
      %483 = vmatpush1.msra.mxu0 0.0
      %484 = vmatprep.subr.mxu0 0.0
      %485 = vmatpush1.msra.mxu0 0.0
      %486 = vmatprep.mubr.f32.mxu0 0.0
      %487 = vmatmul.mubr.f32.gmra.mrb[0].mxu0 %v411
      %v488 = vpop.f32.mrb[0].mxu0
      %v489 = vadd.f32 %v392, %v488
      %v490 = vpop.f32.mrb[0].mxu0
      %v491 = vadd.f32 %v392, %v490
      %492 = vmatprep.mubr.f32.mxu0 0.0
      %493 = vmatmul.mubr.f32.gmra.mrb[0].mxu0 %v414
      %v494 = vpop.f32.mrb[0].mxu0
      %v495 = vadd.f32 %v397, %v494
      %v496 = vpop.f32.mrb[0].mxu0
      %v497 = vadd.f32 %v397, %v496
      %498 = vmatprep.mubr.f32.mxu0 0.0
      %499 = vmatmul.mubr.f32.gmra.mrb[0].mxu0 %v417
      %v500 = vpop.f32.mrb[0].mxu0
      %v501 = vadd.f32 %v402, %v500
      %v502 = vpop.f32.mrb[0].mxu0
      %v503 = vadd.f32 %v402, %v502
      %504 = vmatprep.mubr.f32.mxu0 0.0
      %505 = vmatmul.mubr.f32.gmra.mrb[0].mxu0 %v420
      %v506 = vpop.f32.mrb[0].mxu0
      %v507 = vadd.f32 %v407, %v506
      %v508 = vpop.f32.mrb[0].mxu0
      %v509 = vadd.f32 %v407, %v508
      %510 = vdwg.mxu0
      %v511 = vmin.f32 %v489, 0.0
      %v512 = vmin.f32 %v491, 0.0
      %v513 = vmin.f32 %v495, 0.0
      %v514 = vmin.f32 %v497, 0.0
      %v515 = vmin.f32 %v501, 0.0
      %v516 = vmin.f32 %v503, 0.0
      %v517 = vmin.f32 %v507, 0.0
      %v518 = vmin.f32 %v509, 0.0
      %v519 = vand.u32 2147483647, %v489
      %v520 = vand.u32 2147483647, %v491
      %v521 = vand.u32 2147483647, %v495
      %v522 = vand.u32 2147483647, %v497
      %v523 = vand.u32 2147483647, %v501
      %v524 = vand.u32 2147483647, %v503
      %v525 = vand.u32 2147483647, %v507
      %v526 = vand.u32 2147483647, %v509
      %v527 = vsub.f32 0.0, %v519
      %v528 = vsub.f32 0.0, %v520
      %v529 = vsub.f32 0.0, %v521
      %v530 = vsub.f32 0.0, %v522
      %v531 = vsub.f32 0.0, %v523
      %v532 = vsub.f32 0.0, %v524
      %v533 = vsub.f32 0.0, %v525
      %v534 = vsub.f32 0.0, %v526
      %v535 = vmul.f32 %v527, 1.442695
      %v536 = vpow.pop %v535
      %v537 = vmul.f32 %v528, 1.442695
      %v538 = vpow.pop %v537
      %v539 = vmul.f32 %v529, 1.442695
      %v540 = vpow.pop %v539
      %v541 = vmul.f32 %v530, 1.442695
      %v542 = vpow.pop %v541
      %v543 = vmul.f32 %v531, 1.442695
      %v544 = vpow.pop %v543
      %v545 = vmul.f32 %v532, 1.442695
      %v546 = vpow.pop %v545
      %v547 = vmul.f32 %v533, 1.442695
      %v548 = vpow.pop %v547
      %v549 = vmul.f32 %v534, 1.442695
      %v550 = vpow.pop %v549
      %v551 = vadd.f32 %v536, 1.0
      %v552 = vadd.f32 %v538, 1.0
      %v553 = vadd.f32 %v540, 1.0
      %v554 = vadd.f32 %v542, 1.0
      %v555 = vadd.f32 %v544, 1.0
      %v556 = vadd.f32 %v546, 1.0
      %v557 = vadd.f32 %v548, 1.0
      %v558 = vadd.f32 %v550, 1.0
      %v559 = vlog2.pop %v551
      %v560 = vmul.f32 %v559, 0.6931472
      %v561 = vlog2.pop %v552
      %v562 = vmul.f32 %v561, 0.6931472
      %v563 = vlog2.pop %v553
      %v564 = vmul.f32 %v563, 0.6931472
      %v565 = vlog2.pop %v554
      %v566 = vmul.f32 %v565, 0.6931472
      %v567 = vlog2.pop %v555
      %v568 = vmul.f32 %v567, 0.6931472
      %v569 = vlog2.pop %v556
      %v570 = vmul.f32 %v569, 0.6931472
      %v571 = vlog2.pop %v557
      %v572 = vmul.f32 %v571, 0.6931472
      %v573 = vlog2.pop %v558
      %v574 = vmul.f32 %v573, 0.6931472
      %v575 = vsub.f32 %v511, %v560
      %v576 = vsub.f32 %v512, %v562
      %v577 = vsub.f32 %v513, %v564
      %v578 = vsub.f32 %v514, %v566
      %v579 = vsub.f32 %v515, %v568
      %v580 = vsub.f32 %v516, %v570
      %v581 = vsub.f32 %v517, %v572
      %v582 = vsub.f32 %v518, %v574
      %583 = vset.pattern.permute.xlu0 1
      %584 = vperm.xlu0 %583, %v385
      %v585 = vpop.permute.xlu0 %584
      %587 = vset.pattern.permute.xlu0 1
      %588 = vperm.xlu0 %587, %v386
      %v589 = vpop.permute.xlu0 %588
      %591 = vset.pattern.permute.xlu0 1
      %592 = vperm.xlu0 %591, %v387
      %v593 = vpop.permute.xlu0 %592
      %595 = vset.pattern.permute.xlu0 1
      %596 = vperm.xlu0 %595, %v388
      %v597 = vpop.permute.xlu0 %596
      %v599 = vsub.f32 %v575, %v585
      %v600 = vsub.f32 %v576, %v585
      %v601 = vsub.f32 %v577, %v589
      %v602 = vsub.f32 %v578, %v589
      %v603 = vsub.f32 %v579, %v593
      %v604 = vsub.f32 %v580, %v593
      %v605 = vsub.f32 %v581, %v597
      %v606 = vsub.f32 %v582, %v597
      %607 = vst [vmem:[%s235] sm:$0xff] %v599
      %608 = vst [vmem:[%s235 + $0x8] sm:$0xff] %v600
      %609 = vst [vmem:[%s235 + $0x10] sm:$0xff] %v601
      %610 = vst [vmem:[%s235 + $0x18] sm:$0xff] %v602
      %611 = vst [vmem:[%s235 + $0x20] sm:$0xff] %v603
      %612 = vst [vmem:[%s235 + $0x28] sm:$0xff] %v604
      %613 = vst [vmem:[%s235 + $0x30] sm:$0xff] %v605
      %614 = vst [vmem:[%s235 + $0x38] sm:$0xff] %v606
      %s615 = smul.u32 2, %s20
      %p616 = scmp.lt.s32.totalorder %s19, 1
      %s617 = scalar_select %p616, %s19, 1
      %p618 = scmp.lt.s32.totalorder %s615, 1
      %s619 = scalar_select %p618, %s615, 1
      %s620 = smul.addr %s617, 8
      %s621 = sadd.s32 %s619, %s620
      %s622 = smul.addr %s621, 8
      %s623 = scalar_lea.vmem %s4, %s622
      // Predicated region
      $region37: #{decoder_track_a_forward.3} parent=35 // pred_check
        %p624 = pneg %p138
      $region38: #{decoder_track_a_forward.3} parent=35 // pred_check_branch
        %626 = sbr.rel (%p624) target = $region40
      $region39: #{decoder_track_a_forward.3} parent=35 // pred_region
        %s627 = smul.u32 2, %s20
      $region40: #{decoder_track_a_forward.3} parent=35 // pred_fallthru
        _
    $region36: #{decoder_track_a_forward.3} parent=5 // pred_fallthru
      _
    %p628 = scmp.le.s32.totalorder 2, %s10
    // Predicated region
    $region41: #{decoder_track_a_forward.3} parent=5 // pred_check
      %p629 = pneg %p628
    $region42: #{decoder_track_a_forward.3} parent=5 // pred_check_branch
      %631 = sbr.rel (%p629) target = $region44
    $region43: #{decoder_track_a_forward.3} parent=5 // pred_region
      %s632 = ssub.s32 %s10, 2
      // Predicated region
      $region45: #{decoder_track_a_forward.3} parent=43 // pred_check
        %p633 = pneg %p144
      $region46: #{decoder_track_a_forward.3} parent=43 // pred_check_branch
        %635 = sbr.rel (%p633) target = $region48
      $region47: #{decoder_track_a_forward.3} parent=43 // pred_region
        %s636 = smul.u32 2, %s22
        %p637 = scmp.lt.s32.totalorder %s21, 1
        %s638 = scalar_select %p637, %s21, 1
        %p639 = scmp.lt.s32.totalorder %s636, 1
        %s640 = scalar_select %p639, %s636, 1
        %s641 = smul.addr %s638, 8
        %s642 = sadd.s32 %s640, %s641
        %s643 = smul.addr %s642, 8
        %s644 = scalar_lea.vmem %s4, %s643
      $region48: #{decoder_track_a_forward.3} parent=43 // pred_fallthru
        _
    $region44: #{decoder_track_a_forward.3} parent=5 // pred_fallthru
      _
  $region6: #{decoder_track_a_forward.3} parent=0 // loop_footer
    %s14 = sadd.s32 1, %s10
  $region7: #{decoder_track_a_forward.3} parent=0 // loop_footer_branch
    %9 = sbr.rel target = $region3
  $region8: #{decoder_track_a_forward.3} parent=0 // loop_exit
    _

// kernel: decoder_track_a_forward.2
$region0: #{decoder_track_a_forward.2}
  #allocation0 [shape = 'u32[]', space=smem, size = 0x4, offset = 0x4, fixed_abs, tag = 'smem constant byte address 0x4 - core index']
  #allocation1 [shape = 'u32[144,128]{1,0:T(1,128)}', space=vmem, size = 0x12000, scoped, tag = 'internal scratch']
  #allocation2 [shape = 'f32[128,1]{1,0:T(8,128)}', space=vmem, size = 0x10000, scoped, tag = 'scratch operand']
  #allocation3 [shape = 'f32[128,1]{1,0:T(8,128)}', space=vmem, size = 0x10000, scoped, tag = 'scratch operand']
  #allocation4 [shape = 'f32[128,1]{1,0:T(8,128)}', space=vmem, size = 0x10000, scoped, tag = 'scratch operand']
  #allocation5 [shape = 'f32[128,1]{1,0:T(8,128)}', space=vmem, size = 0x10000, scoped, tag = 'scratch operand']
  #allocation6 [shape = 'f32[64,1]{1,0:T(8,128)}', space=vmem, size = 0x8000, scoped, tag = 'scratch operand']
  #allocation7 [shape = 'f32[64,1]{1,0:T(8,128)}', space=vmem, size = 0x8000, scoped, tag = 'scratch operand']
  %s0 = inlined_call_operand.vmem [shape: f32[2,256,256], index: 0, kind: input, shape index: {}]
  %s1 = inlined_call_operand.vmem [shape: f32[128,256], index: 1, kind: input, shape index: {}]
  %s2 = inlined_call_operand.vmem [shape: f32[128,2], index: 2, kind: input, shape index: {}]
  %s3 = inlined_call_operand.vmem [shape: f32[64,128], index: 3, kind: input, shape index: {}]
  %s4 = inlined_call_operand.vmem [shape: f32[2,64,256], index: 4, kind: output, shape index: {0}]
  %s5 = inlined_call_operand.vmem [shape: f32[64,2], index: 5, kind: output, shape index: {1}]
  %6 = xla_tuple %s4, %s5
  %s7 = sld [smem:[#allocation0]]
  $region73: #{decoder_track_a_forward.2} parent=0
    _
  %s9 = ssub.s32 1, %s7
  %s10 = scalar_select 0, %s9, %s7
  loop: start=0, step=1, limit=6
  $region2: #{decoder_track_a_forward.2} parent=0 // loop_pre_header
    _
  $region3: #{decoder_track_a_forward.2} parent=0 // loop_header
    %s12 = sphi 0, %s16
    %p13 = scmp.ge.s32.totalorder %s12, 6
    %s19 = sphi 0, %s38
    %s20 = sphi 0, %s34
    %s21 = sphi 0, %s30
    %s22 = sphi 0, %s19
    %s23 = sphi 0, %s20
    %s24 = sphi 0, %s21
    %s25 = sphi 0, %s22
    %s26 = sphi 0, %s23
    %s27 = sphi 0, %s24
    %s43 = sphi 0, %s45
    %s46 = sphi 0, %s43
    %s47 = sphi 0, %s46
    %s63 = sphi 0, %s47
    %s67 = sphi 0, %s67
    %s69 = sphi 0, %s67
    %s70 = sphi 0, %s69
    %s84 = sphi 0, %s70
    %s88 = sphi 0, %s88
    %s90 = sphi 0, %s88
    %s91 = sphi 0, %s90
    %s105 = sphi 0, %s91
    %s109 = sphi 0, %s109
    %s111 = sphi 0, %s109
    %s112 = sphi 0, %s111
    %s126 = sphi 0, %s112
    %s138 = sphi 0, %s140
    %s141 = sphi 0, %s138
    %s142 = sphi 0, %s141
    %s158 = sphi 0, %s142
    %s162 = sphi 0, %s162
    %s164 = sphi 0, %s162
    %s165 = sphi 0, %s164
    %s179 = sphi 0, %s165
  $region4: #{decoder_track_a_forward.2} parent=0 // loop_header_branch
    %15 = sbr.rel (%p13) target = $region8
  $region5: #{decoder_track_a_forward.2} parent=0 // loop_body
    %s17 = ssub.s32 %s12, 1
    %s18 = ssub.s32 %s12, 2
    %s28 = sadd.s32 1, %s21
    %p29 = scmp.ge.s32.totalorder %s28, 1
    %s30 = scalar_select %p29, 0, %s28
    %s31 = sadd.s32 1, %s20
    %s32 = scalar_select %p29, %s31, %s20
    %p33 = scmp.ge.s32.totalorder %s32, 2
    %s34 = scalar_select %p33, 0, %s32
    %s35 = sadd.s32 1, %s19
    %s36 = scalar_select %p33, %s35, %s19
    %p37 = scmp.ge.s32.totalorder %s36, 2
    %s38 = scalar_select %p37, 0, %s36
    %s39 = ssub.s32 %s20, %s34
    %s40 = ssub.s32 %s21, %s30
    %s41 = sor.u32 %s39, %s40
    %p42 = scmp.eq.s32.totalorder %s41, 0
    %s44 = sadd.s32 %s43, 1
    %s45 = scalar_select %p42, %s43, %s44
    %p48 = pneg %p42
    %p49 = scmp.eq.s32.totalorder %s12, 3
    %p50 = por %p48, %p49
    %p51 = scmp.ne.s32.totalorder %s43, %s46
    %p52 = scmp.eq.s32.totalorder %s12, 0
    %p53 = por %p51, %p52
    %p54 = scmp.ne.s32.totalorder %s43, %s46
    %p55 = scmp.eq.s32.totalorder %s17, 3
    %p56 = por %p54, %p55
    %p57 = scmp.ne.s32.totalorder %s46, %s47
    %p58 = scmp.eq.s32.totalorder %s17, 0
    %p59 = por %p57, %p58
    %p60 = scmp.ne.s32.totalorder %s46, %s47
    %p61 = scmp.eq.s32.totalorder %s18, 3
    %p62 = por %p60, %p61
    %p64 = scmp.ne.s32.totalorder %s47, %s63
    %p65 = scmp.eq.s32.totalorder %s18, 0
    %p66 = por %p64, %p65
    %s68 = sadd.s32 %s67, 1
    %p71 = scmp.eq.s32.totalorder %s12, 3
    %p72 = scmp.ne.s32.totalorder %s67, %s69
    %p73 = scmp.eq.s32.totalorder %s12, 0
    %p74 = por %p72, %p73
    %p75 = scmp.ne.s32.totalorder %s67, %s69
    %p76 = scmp.eq.s32.totalorder %s17, 3
    %p77 = por %p75, %p76
    %p78 = scmp.ne.s32.totalorder %s69, %s70
    %p79 = scmp.eq.s32.totalorder %s17, 0
    %p80 = por %p78, %p79
    %p81 = scmp.ne.s32.totalorder %s69, %s70
    %p82 = scmp.eq.s32.totalorder %s18, 3
    %p83 = por %p81, %p82
    %p85 = scmp.ne.s32.totalorder %s70, %s84
    %p86 = scmp.eq.s32.totalorder %s18, 0
    %p87 = por %p85, %p86
    %s89 = sadd.s32 %s88, 1
    %p92 = scmp.eq.s32.totalorder %s12, 3
    %p93 = scmp.ne.s32.totalorder %s88, %s90
    %p94 = scmp.eq.s32.totalorder %s12, 0
    %p95 = por %p93, %p94
    %p96 = scmp.ne.s32.totalorder %s88, %s90
    %p97 = scmp.eq.s32.totalorder %s17, 3
    %p98 = por %p96, %p97
    %p99 = scmp.ne.s32.totalorder %s90, %s91
    %p100 = scmp.eq.s32.totalorder %s17, 0
    %p101 = por %p99, %p100
    %p102 = scmp.ne.s32.totalorder %s90, %s91
    %p103 = scmp.eq.s32.totalorder %s18, 3
    %p104 = por %p102, %p103
    %p106 = scmp.ne.s32.totalorder %s91, %s105
    %p107 = scmp.eq.s32.totalorder %s18, 0
    %p108 = por %p106, %p107
    %s110 = sadd.s32 %s109, 1
    %p113 = scmp.eq.s32.totalorder %s12, 3
    %p114 = scmp.ne.s32.totalorder %s109, %s111
    %p115 = scmp.eq.s32.totalorder %s12, 0
    %p116 = por %p114, %p115
    %p117 = scmp.ne.s32.totalorder %s109, %s111
    %p118 = scmp.eq.s32.totalorder %s17, 3
    %p119 = por %p117, %p118
    %p120 = scmp.ne.s32.totalorder %s111, %s112
    %p121 = scmp.eq.s32.totalorder %s17, 0
    %p122 = por %p120, %p121
    %p123 = scmp.ne.s32.totalorder %s111, %s112
    %p124 = scmp.eq.s32.totalorder %s18, 3
    %p125 = por %p123, %p124
    %p127 = scmp.ne.s32.totalorder %s112, %s126
    %p128 = scmp.eq.s32.totalorder %s18, 0
    %p129 = por %p127, %p128
    %s130 = smul.u32 %s20, %s19
    %s131 = smul.u32 %s21, %s19
    %s132 = smul.u32 %s34, %s38
    %s133 = smul.u32 %s30, %s38
    %s134 = ssub.s32 %s130, %s132
    %s135 = ssub.s32 %s131, %s133
    %s136 = sor.u32 %s134, %s135
    %p137 = scmp.eq.s32.totalorder %s136, 0
    %s139 = sadd.s32 %s138, 1
    %s140 = scalar_select %p137, %s138, %s139
    %p143 = pneg %p137
    %p144 = scmp.eq.s32.totalorder %s12, 3
    %p145 = por %p143, %p144
    %p146 = scmp.ne.s32.totalorder %s138, %s141
    %p147 = scmp.eq.s32.totalorder %s12, 0
    %p148 = por %p146, %p147
    %p149 = scmp.ne.s32.totalorder %s138, %s141
    %p150 = scmp.eq.s32.totalorder %s17, 3
    %p151 = por %p149, %p150
    %p152 = scmp.ne.s32.totalorder %s141, %s142
    %p153 = scmp.eq.s32.totalorder %s17, 0
    %p154 = por %p152, %p153
    %p155 = scmp.ne.s32.totalorder %s141, %s142
    %p156 = scmp.eq.s32.totalorder %s18, 3
    %p157 = por %p155, %p156
    %p159 = scmp.ne.s32.totalorder %s142, %s158
    %p160 = scmp.eq.s32.totalorder %s18, 0
    %p161 = por %p159, %p160
    %s163 = sadd.s32 %s162, 1
    %p166 = scmp.eq.s32.totalorder %s12, 3
    %p167 = scmp.ne.s32.totalorder %s162, %s164
    %p168 = scmp.eq.s32.totalorder %s12, 0
    %p169 = por %p167, %p168
    %p170 = scmp.ne.s32.totalorder %s162, %s164
    %p171 = scmp.eq.s32.totalorder %s17, 3
    %p172 = por %p170, %p171
    %p173 = scmp.ne.s32.totalorder %s164, %s165
    %p174 = scmp.eq.s32.totalorder %s17, 0
    %p175 = por %p173, %p174
    %p176 = scmp.ne.s32.totalorder %s164, %s165
    %p177 = scmp.eq.s32.totalorder %s18, 3
    %p178 = por %p176, %p177
    %p180 = scmp.ne.s32.totalorder %s165, %s179
    %p181 = scmp.eq.s32.totalorder %s18, 0
    %p182 = por %p180, %p181
    %p183 = scmp.le.s32.totalorder 1, %s12
    %p184 = scmp.lt.s32.totalorder %s12, 5
    %p185 = pnand %p183, %p184
    %p186 = pneg %p185
    // Predicated region
    $region9: #{decoder_track_a_forward.2} parent=5 // pred_check
      _
    $region10: #{decoder_track_a_forward.2} parent=5 // pred_check_branch
      %188 = sbr.rel (%p185) target = $region12
    $region11: #{decoder_track_a_forward.2} parent=5 // pred_region
      %s189 = ssub.s32 %s12, 1
      // Predicated region
      $region13: #{decoder_track_a_forward.2} parent=11 // pred_check
        %p190 = pneg %p80
      $region14: #{decoder_track_a_forward.2} parent=11 // pred_check_branch
        %192 = sbr.rel (%p190) target = $region16
      $region15: #{decoder_track_a_forward.2} parent=11 // pred_region
        _
      $region16: #{decoder_track_a_forward.2} parent=11 // pred_fallthru
        _
      // Predicated region
      $region17: #{decoder_track_a_forward.2} parent=11 // pred_check
        %p193 = pneg %p101
      $region18: #{decoder_track_a_forward.2} parent=11 // pred_check_branch
        %195 = sbr.rel (%p193) target = $region20
      $region19: #{decoder_track_a_forward.2} parent=11 // pred_region
        _
      $region20: #{decoder_track_a_forward.2} parent=11 // pred_fallthru
        _
      // Predicated region
      $region21: #{decoder_track_a_forward.2} parent=11 // pred_check
        %p196 = pneg %p122
      $region22: #{decoder_track_a_forward.2} parent=11 // pred_check_branch
        %198 = sbr.rel (%p196) target = $region24
      $region23: #{decoder_track_a_forward.2} parent=11 // pred_region
        _
      $region24: #{decoder_track_a_forward.2} parent=11 // pred_fallthru
        _
    $region12: #{decoder_track_a_forward.2} parent=5 // pred_fallthru
      _
    %p199 = scmp.lt.s32.totalorder %s12, 4
    // Predicated region
    $region25: #{decoder_track_a_forward.2} parent=5 // pred_check
      %p200 = pneg %p199
    $region26: #{decoder_track_a_forward.2} parent=5 // pred_check_branch
      %202 = sbr.rel (%p200) target = $region28
    $region27: #{decoder_track_a_forward.2} parent=5 // pred_region
      // Predicated region
      $region29: #{decoder_track_a_forward.2} parent=27 // pred_check
        %p203 = pneg %p53
      $region30: #{decoder_track_a_forward.2} parent=27 // pred_check_branch
        %205 = sbr.rel (%p203) target = $region32
      $region31: #{decoder_track_a_forward.2} parent=27 // pred_region
        %s206 = smul.u32 2, %s21
        %p207 = scmp.lt.s32.totalorder %s20, 1
        %s208 = scalar_select %p207, %s20, 1
        %p209 = scmp.lt.s32.totalorder %s206, 1
        %s210 = scalar_select %p209, %s206, 1
        %s211 = smul.addr %s208, 64
        %s212 = sadd.s32 %s210, %s211
        %s213 = smul.addr %s212, 8
        %s214 = scalar_lea.vmem %s0, %s213
        %s215 = smul.u32 2, %s21
      $region32: #{decoder_track_a_forward.2} parent=27 // pred_fallthru
        _
    $region28: #{decoder_track_a_forward.2} parent=5 // pred_fallthru
      _
    %p216 = scmp.le.s32.totalorder 1, %s12
    %p217 = scmp.lt.s32.totalorder %s12, 5
    %p218 = pnand %p216, %p217
    %p219 = pneg %p218
    // Predicated region
    $region33: #{decoder_track_a_forward.2} parent=5 // pred_check
      _
    $region34: #{decoder_track_a_forward.2} parent=5 // pred_check_branch
      %221 = sbr.rel (%p218) target = $region36
    $region35: #{decoder_track_a_forward.2} parent=5 // pred_region
      %s222 = ssub.s32 %s12, 1
      %s223 = smul.u32 2, %s24
      %p224 = scmp.lt.s32.totalorder %s23, 1
      %s225 = scalar_select %p224, %s23, 1
      %p226 = scmp.lt.s32.totalorder %s223, 1
      %s227 = scalar_select %p226, %s223, 1
      %s228 = smul.addr %s225, 64
      %s229 = sadd.s32 %s227, %s228
      %s230 = smul.addr %s229, 8
      %s231 = scalar_lea.vmem %s0, %s230
      %p232 = pneg %p59
      %p233 = pneg %p56
      %p234 = pneg %p80
      %p235 = pneg %p77
      %p236 = pneg %p101
      %p237 = pneg %p98
      %p238 = pneg %p122
      %p239 = pneg %p119
      %p240 = pneg %p154
      %p241 = pneg %p151
      %s242 = smul.u32 %s23, %s22
      %s243 = smul.u32 %s24, %s22
      %s244 = smul.u32 2, %s243
      %p245 = scmp.lt.s32.totalorder %s242, 1
      %s246 = scalar_select %p245, %s242, 1
      %p247 = scmp.lt.s32.totalorder %s244, 1
      %s248 = scalar_select %p247, %s244, 1
      %s249 = smul.addr %s246, 16
      %s250 = sadd.s32 %s248, %s249
      %s251 = smul.addr %s250, 8
      %s252 = scalar_lea.vmem %s4, %s251
      %p253 = pneg %p175
      %p254 = pneg %p172
      %s255 = smul.u32 2, %s24
      %p256 = scmp.lt.s32.totalorder %s23, 1
      %s257 = scalar_select %p256, %s23, 1
      %p258 = scmp.lt.s32.totalorder %s255, 1
      %s259 = scalar_select %p258, %s255, 1
      %s260 = smul.addr %s257, 64
      %s261 = sadd.s32 %s259, %s260
      %s262 = smul.addr %s261, 8
      %s263 = scalar_lea.vmem %s0, %s262
      %s264 = smul.u32 2, %s24
      %s265 = smul.u32 %s23, %s22
      %s266 = smul.u32 %s24, %s22
      %s267 = smul.u32 2, %s266
      %p268 = scmp.lt.s32.totalorder %s265, 1
      %s269 = scalar_select %p268, %s265, 1
      %p270 = scmp.lt.s32.totalorder %s267, 1
      %s271 = scalar_select %p270, %s267, 1
      %s272 = smul.addr %s269, 16
      %s273 = sadd.s32 %s271, %s272
      %s274 = smul.addr %s273, 8
      %s275 = scalar_lea.vmem %s4, %s274
      %s276 = smul.u32 %s23, %s22
      %s277 = smul.u32 %s24, %s22
      %s278 = smul.u32 2, %s277
      %p279 = scmp.eq.s32.totalorder %s23, 0
      %p280 = scmp.eq.s32.totalorder %s24, 0
      %p281 = pnand %p279, %p280
      %p282 = pneg %p281
      %v283 = vld [vmem:[%s1] sm:$0xff]
      %v284 = vld [vmem:[%s1 + $0x8] sm:$0xff]
      %v285 = vld [vmem:[%s1 + $0x10] sm:$0xff]
      %v286 = vld [vmem:[%s1 + $0x18] sm:$0xff]
      %v287 = vld [vmem:[%s1 + $0x20] sm:$0xff]
      %v288 = vld [vmem:[%s1 + $0x28] sm:$0xff]
      %v289 = vld [vmem:[%s1 + $0x30] sm:$0xff]
      %v290 = vld [vmem:[%s1 + $0x38] sm:$0xff]
      %v291 = vld [vmem:[%s1 + $0x40] sm:$0xff]
      %v292 = vld [vmem:[%s1 + $0x48] sm:$0xff]
      %v293 = vld [vmem:[%s1 + $0x50] sm:$0xff]
      %v294 = vld [vmem:[%s1 + $0x58] sm:$0xff]
      %v295 = vld [vmem:[%s1 + $0x60] sm:$0xff]
      %v296 = vld [vmem:[%s1 + $0x68] sm:$0xff]
      %v297 = vld [vmem:[%s1 + $0x70] sm:$0xff]
      %v298 = vld [vmem:[%s1 + $0x78] sm:$0xff]
      %v299 = vld [vmem:[%s1 + $0x80] sm:$0xff]
      %v300 = vld [vmem:[%s1 + $0x88] sm:$0xff]
      %v301 = vld [vmem:[%s1 + $0x90] sm:$0xff]
      %v302 = vld [vmem:[%s1 + $0x98] sm:$0xff]
      %v303 = vld [vmem:[%s1 + $0xa0] sm:$0xff]
      %v304 = vld [vmem:[%s1 + $0xa8] sm:$0xff]
      %v305 = vld [vmem:[%s1 + $0xb0] sm:$0xff]
      %v306 = vld [vmem:[%s1 + $0xb8] sm:$0xff]
      %v307 = vld [vmem:[%s1 + $0xc0] sm:$0xff]
      %v308 = vld [vmem:[%s1 + $0xc8] sm:$0xff]
      %v309 = vld [vmem:[%s1 + $0xd0] sm:$0xff]
      %v310 = vld [vmem:[%s1 + $0xd8] sm:$0xff]
      %v311 = vld [vmem:[%s1 + $0xe0] sm:$0xff]
      %v312 = vld [vmem:[%s1 + $0xe8] sm:$0xff]
      %v313 = vld [vmem:[%s1 + $0xf0] sm:$0xff]
      %v314 = vld [vmem:[%s1 + $0xf8] sm:$0xff]
      %v315 = vld [vmem:[%s263] sm:$0xff]
      %v316 = vld [vmem:[%s263 + $0x8] sm:$0xff]
      %v317 = vld [vmem:[%s263 + $0x10] sm:$0xff]
      %v318 = vld [vmem:[%s263 + $0x18] sm:$0xff]
      %v319 = vld [vmem:[%s263 + $0x20] sm:$0xff]
      %v320 = vld [vmem:[%s263 + $0x28] sm:$0xff]
      %v321 = vld [vmem:[%s263 + $0x30] sm:$0xff]
      %v322 = vld [vmem:[%s263 + $0x38] sm:$0xff]
      %v323 = vld [vmem:[%s263 + $0x40] sm:$0xff]
      %v324 = vld [vmem:[%s263 + $0x48] sm:$0xff]
      %v325 = vld [vmem:[%s263 + $0x50] sm:$0xff]
      %v326 = vld [vmem:[%s263 + $0x58] sm:$0xff]
      %v327 = vld [vmem:[%s263 + $0x60] sm:$0xff]
      %v328 = vld [vmem:[%s263 + $0x68] sm:$0xff]
      %v329 = vld [vmem:[%s263 + $0x70] sm:$0xff]
      %v330 = vld [vmem:[%s263 + $0x78] sm:$0xff]
      %v331 = vld [vmem:[%s263 + $0x80] sm:$0xff]
      %v332 = vld [vmem:[%s263 + $0x88] sm:$0xff]
      %v333 = vld [vmem:[%s263 + $0x90] sm:$0xff]
      %v334 = vld [vmem:[%s263 + $0x98] sm:$0xff]
      %v335 = vld [vmem:[%s263 + $0xa0] sm:$0xff]
      %v336 = vld [vmem:[%s263 + $0xa8] sm:$0xff]
      %v337 = vld [vmem:[%s263 + $0xb0] sm:$0xff]
      %v338 = vld [vmem:[%s263 + $0xb8] sm:$0xff]
      %v339 = vld [vmem:[%s263 + $0xc0] sm:$0xff]
      %v340 = vld [vmem:[%s263 + $0xc8] sm:$0xff]
      %v341 = vld [vmem:[%s263 + $0xd0] sm:$0xff]
      %v342 = vld [vmem:[%s263 + $0xd8] sm:$0xff]
      %v343 = vld [vmem:[%s263 + $0xe0] sm:$0xff]
      %v344 = vld [vmem:[%s263 + $0xe8] sm:$0xff]
      %v345 = vld [vmem:[%s263 + $0xf0] sm:$0xff]
      %v346 = vld [vmem:[%s263 + $0xf8] sm:$0xff]
      %v347 = vld [vmem:[%s263 + $0x100] sm:$0xff]
      %v348 = vld [vmem:[%s263 + $0x108] sm:$0xff]
      %v349 = vld [vmem:[%s263 + $0x110] sm:$0xff]
      %v350 = vld [vmem:[%s263 + $0x118] sm:$0xff]
      %v351 = vld [vmem:[%s263 + $0x120] sm:$0xff]
      %v352 = vld [vmem:[%s263 + $0x128] sm:$0xff]
      %v353 = vld [vmem:[%s263 + $0x130] sm:$0xff]
      %v354 = vld [vmem:[%s263 + $0x138] sm:$0xff]
      %v355 = vld [vmem:[%s263 + $0x140] sm:$0xff]
      %v356 = vld [vmem:[%s263 + $0x148] sm:$0xff]
      %v357 = vld [vmem:[%s263 + $0x150] sm:$0xff]
      %v358 = vld [vmem:[%s263 + $0x158] sm:$0xff]
      %v359 = vld [vmem:[%s263 + $0x160] sm:$0xff]
      %v360 = vld [vmem:[%s263 + $0x168] sm:$0xff]
      %v361 = vld [vmem:[%s263 + $0x170] sm:$0xff]
      %v362 = vld [vmem:[%s263 + $0x178] sm:$0xff]
      %v363 = vld [vmem:[%s263 + $0x180] sm:$0xff]
      %v364 = vld [vmem:[%s263 + $0x188] sm:$0xff]
      %v365 = vld [vmem:[%s263 + $0x190] sm:$0xff]
      %v366 = vld [vmem:[%s263 + $0x198] sm:$0xff]
      %v367 = vld [vmem:[%s263 + $0x1a0] sm:$0xff]
      %v368 = vld [vmem:[%s263 + $0x1a8] sm:$0xff]
      %v369 = vld [vmem:[%s263 + $0x1b0] sm:$0xff]
      %v370 = vld [vmem:[%s263 + $0x1b8] sm:$0xff]
      %v371 = vld [vmem:[%s263 + $0x1c0] sm:$0xff]
      %v372 = vld [vmem:[%s263 + $0x1c8] sm:$0xff]
      %v373 = vld [vmem:[%s263 + $0x1d0] sm:$0xff]
      %v374 = vld [vmem:[%s263 + $0x1d8] sm:$0xff]
      %v375 = vld [vmem:[%s263 + $0x1e0] sm:$0xff]
      %v376 = vld [vmem:[%s263 + $0x1e8] sm:$0xff]
      %v377 = vld [vmem:[%s263 + $0x1f0] sm:$0xff]
      %v378 = vld [vmem:[%s263 + $0x1f8] sm:$0xff]
      %379 = vmatprep.subr.mxu0 %v316
      %380 = vmatpush1.msra.mxu0 %v315
      %381 = vmatprep.subr.mxu0 %v318
      %382 = vmatpush1.msra.mxu0 %v317
      %383 = vmatprep.subr.mxu0 %v320
      %384 = vmatpush1.msra.mxu0 %v319
      %385 = vmatprep.subr.mxu0 %v322
      %386 = vmatpush1.msra.mxu0 %v321
      %387 = vmatprep.subr.mxu0 %v324
      %388 = vmatpush1.msra.mxu0 %v323
      %389 = vmatprep.subr.mxu0 %v326
      %390 = vmatpush1.msra.mxu0 %v325
      %391 = vmatprep.subr.mxu0 %v328
      %392 = vmatpush1.msra.mxu0 %v327
      %393 = vmatprep.subr.mxu0 %v330
      %394 = vmatpush1.msra.mxu0 %v329
      %395 = vmatprep.subr.mxu0 %v332
      %396 = vmatpush1.msra.mxu0 %v331
      %397 = vmatprep.subr.mxu0 %v334
      %398 = vmatpush1.msra.mxu0 %v333
      %399 = vmatprep.subr.mxu0 %v336
      %400 = vmatpush1.msra.mxu0 %v335
      %401 = vmatprep.subr.mxu0 %v338
      %402 = vmatpush1.msra.mxu0 %v337
      %403 = vmatprep.subr.mxu0 %v340
      %404 = vmatpush1.msra.mxu0 %v339
      %405 = vmatprep.subr.mxu0 %v342
      %406 = vmatpush1.msra.mxu0 %v341
      %407 = vmatprep.subr.mxu0 %v344
      %408 = vmatpush1.msra.mxu0 %v343
      %409 = vmatprep.subr.mxu0 %v346
      %410 = vmatpush1.msra.mxu0 %v345
      %411 = vmatprep.subr.mxu0 %v348
      %412 = vmatpush1.msra.mxu0 %v347
      %413 = vmatprep.subr.mxu0 %v350
      %414 = vmatpush1.msra.mxu0 %v349
      %415 = vmatprep.subr.mxu0 %v352
      %416 = vmatpush1.msra.mxu0 %v351
      %417 = vmatprep.subr.mxu0 %v354
      %418 = vmatpush1.msra.mxu0 %v353
      %419 = vmatprep.subr.mxu0 %v356
      %420 = vmatpush1.msra.mxu0 %v355
      %421 = vmatprep.subr.mxu0 %v358
      %422 = vmatpush1.msra.mxu0 %v357
      %423 = vmatprep.subr.mxu0 %v360
      %424 = vmatpush1.msra.mxu0 %v359
      %425 = vmatprep.subr.mxu0 %v362
      %426 = vmatpush1.msra.mxu0 %v361
      %427 = vmatprep.subr.mxu0 %v364
      %428 = vmatpush1.msra.mxu0 %v363
      %429 = vmatprep.subr.mxu0 %v366
      %430 = vmatpush1.msra.mxu0 %v365
      %431 = vmatprep.subr.mxu0 %v368
      %432 = vmatpush1.msra.mxu0 %v367
      %433 = vmatprep.subr.mxu0 %v370
      %434 = vmatpush1.msra.mxu0 %v369
      %435 = vmatprep.subr.mxu0 %v372
      %436 = vmatpush1.msra.mxu0 %v371
      %437 = vmatprep.subr.mxu0 %v374
      %438 = vmatpush1.msra.mxu0 %v373
      %439 = vmatprep.subr.mxu0 %v376
      %440 = vmatpush1.msra.mxu0 %v375
      %441 = vmatprep.subr.mxu0 %v378
      %442 = vmatpush1.msra.mxu0 %v377
      %443 = vmatprep.mubr.f32.mxu0 %v284
      %444 = vmatmul.mubr.f32.gmra.mrb[0].mxu0 %v283
      %v445 = vpop.f32.mrb[0].mxu0
      %v446 = vadd.f32 0.0, %v445
      %v447 = vpop.f32.mrb[0].mxu0
      %v448 = vadd.f32 0.0, %v447
      %449 = vmatprep.mubr.f32.mxu0 %v286
      %450 = vmatmul.mubr.f32.gmra.mrb[0].mxu0 %v285
      %v451 = vpop.f32.mrb[0].mxu0
      %v452 = vadd.f32 0.0, %v451
      %v453 = vpop.f32.mrb[0].mxu0
      %v454 = vadd.f32 0.0, %v453
      %455 = vmatprep.mubr.f32.mxu0 %v288
      %456 = vmatmul.mubr.f32.gmra.mrb[0].mxu0 %v287
      %v457 = vpop.f32.mrb[0].mxu0
      %v458 = vadd.f32 0.0, %v457
      %v459 = vpop.f32.mrb[0].mxu0
      %v460 = vadd.f32 0.0, %v459
      %461 = vmatprep.mubr.f32.mxu0 %v290
      %462 = vmatmul.mubr.f32.gmra.mrb[0].mxu0 %v289
      %v463 = vpop.f32.mrb[0].mxu0
      %v464 = vadd.f32 0.0, %v463
      %v465 = vpop.f32.mrb[0].mxu0
      %v466 = vadd.f32 0.0, %v465
      %467 = vmatprep.mubr.f32.mxu0 %v292
      %468 = vmatmul.mubr.f32.gmra.mrb[0].mxu0 %v291
      %v469 = vpop.f32.mrb[0].mxu0
      %v470 = vadd.f32 0.0, %v469
      %v471 = vpop.f32.mrb[0].mxu0
      %v472 = vadd.f32 0.0, %v471
      %473 = vmatprep.mubr.f32.mxu0 %v294
      %474 = vmatmul.mubr.f32.gmra.mrb[0].mxu0 %v293
      %v475 = vpop.f32.mrb[0].mxu0
      %v476 = vadd.f32 0.0, %v475
      %v477 = vpop.f32.mrb[0].mxu0
      %v478 = vadd.f32 0.0, %v477
      %479 = vmatprep.mubr.f32.mxu0 %v296
      %480 = vmatmul.mubr.f32.gmra.mrb[0].mxu0 %v295
      %v481 = vpop.f32.mrb[0].mxu0
      %v482 = vadd.f32 0.0, %v481
      %v483 = vpop.f32.mrb[0].mxu0
      %v484 = vadd.f32 0.0, %v483
      %485 = vmatprep.mubr.f32.mxu0 %v298
      %486 = vmatmul.mubr.f32.gmra.mrb[0].mxu0 %v297
      %v487 = vpop.f32.mrb[0].mxu0
      %v488 = vadd.f32 0.0, %v487
      %v489 = vpop.f32.mrb[0].mxu0
      %v490 = vadd.f32 0.0, %v489
      %491 = vmatprep.mubr.f32.mxu0 %v300
      %492 = vmatmul.mubr.f32.gmra.mrb[0].mxu0 %v299
      %v493 = vpop.f32.mrb[0].mxu0
      %v494 = vadd.f32 0.0, %v493
      %v495 = vpop.f32.mrb[0].mxu0
      %v496 = vadd.f32 0.0, %v495
      %497 = vmatprep.mubr.f32.mxu0 %v302
      %498 = vmatmul.mubr.f32.gmra.mrb[0].mxu0 %v301
      %v499 = vpop.f32.mrb[0].mxu0
      %v500 = vadd.f32 0.0, %v499
      %v501 = vpop.f32.mrb[0].mxu0
      %v502 = vadd.f32 0.0, %v501
      %503 = vmatprep.mubr.f32.mxu0 %v304
      %504 = vmatmul.mubr.f32.gmra.mrb[0].mxu0 %v303
      %v505 = vpop.f32.mrb[0].mxu0
      %v506 = vadd.f32 0.0, %v505
      %v507 = vpop.f32.mrb[0].mxu0
      %v508 = vadd.f32 0.0, %v507
      %509 = vmatprep.mubr.f32.mxu0 %v306
      %510 = vmatmul.mubr.f32.gmra.mrb[0].mxu0 %v305
      %v511 = vpop.f32.mrb[0].mxu0
      %v512 = vadd.f32 0.0, %v511
      %v513 = vpop.f32.mrb[0].mxu0
      %v514 = vadd.f32 0.0, %v513
      %515 = vmatprep.mubr.f32.mxu0 %v308
      %516 = vmatmul.mubr.f32.gmra.mrb[0].mxu0 %v307
      %v517 = vpop.f32.mrb[0].mxu0
      %v518 = vadd.f32 0.0, %v517
      %v519 = vpop.f32.mrb[0].mxu0
      %v520 = vadd.f32 0.0, %v519
      %521 = vmatprep.mubr.f32.mxu0 %v310
      %522 = vmatmul.mubr.f32.gmra.mrb[0].mxu0 %v309
      %v523 = vpop.f32.mrb[0].mxu0
      %v524 = vadd.f32 0.0, %v523
      %v525 = vpop.f32.mrb[0].mxu0
      %v526 = vadd.f32 0.0, %v525
      %527 = vmatprep.mubr.f32.mxu0 %v312
      %528 = vmatmul.mubr.f32.gmra.mrb[0].mxu0 %v311
      %v529 = vpop.f32.mrb[0].mxu0
      %v530 = vadd.f32 0.0, %v529
      %v531 = vpop.f32.mrb[0].mxu0
      %v532 = vadd.f32 0.0, %v531
      %533 = vmatprep.mubr.f32.mxu0 %v314
      %534 = vmatmul.mubr.f32.gmra.mrb[0].mxu0 %v313
      %v535 = vpop.f32.mrb[0].mxu0
      %v536 = vadd.f32 0.0, %v535
      %v537 = vpop.f32.mrb[0].mxu0
      %v538 = vadd.f32 0.0, %v537
      %539 = vdwg.mxu0
      %p540 = scmp.eq.s32.totalorder %s22, 0
      %p541 = pnand %p540, %p282
      %p542 = pneg %p541
      // Predicated region
      $region37: #{decoder_track_a_forward.2} parent=35 // pred_check
        _
      $region38: #{decoder_track_a_forward.2} parent=35 // pred_check_branch
        %544 = sbr.rel (%p541) target = $region40
      $region39: #{decoder_track_a_forward.2} parent=35 // pred_region
        %vm545 = vcmask 7168
        %546 = vst.msk [vmem:[#allocation2] sm:$0xff] %vm545, 0.0
        %547 = vst.msk [vmem:[#allocation2 + $0x8] sm:$0xff] %vm545, 0.0
        %548 = vst.msk [vmem:[#allocation2 + $0x10] sm:$0xff] %vm545, 0.0
        %549 = vst.msk [vmem:[#allocation2 + $0x18] sm:$0xff] %vm545, 0.0
        %550 = vst.msk [vmem:[#allocation2 + $0x20] sm:$0xff] %vm545, 0.0
        %551 = vst.msk [vmem:[#allocation2 + $0x28] sm:$0xff] %vm545, 0.0
        %552 = vst.msk [vmem:[#allocation2 + $0x30] sm:$0xff] %vm545, 0.0
        %553 = vst.msk [vmem:[#allocation2 + $0x38] sm:$0xff] %vm545, 0.0
        %554 = vst.msk [vmem:[#allocation2 + $0x40] sm:$0xff] %vm545, 0.0
        %555 = vst.msk [vmem:[#allocation2 + $0x48] sm:$0xff] %vm545, 0.0
        %556 = vst.msk [vmem:[#allocation2 + $0x50] sm:$0xff] %vm545, 0.0
        %557 = vst.msk [vmem:[#allocation2 + $0x58] sm:$0xff] %vm545, 0.0
        %558 = vst.msk [vmem:[#allocation2 + $0x60] sm:$0xff] %vm545, 0.0
        %559 = vst.msk [vmem:[#allocation2 + $0x68] sm:$0xff] %vm545, 0.0
        %560 = vst.msk [vmem:[#allocation2 + $0x70] sm:$0xff] %vm545, 0.0
        %561 = vst.msk [vmem:[#allocation2 + $0x78] sm:$0xff] %vm545, 0.0
        %562 = vst.msk [vmem:[#allocation3] sm:$0xff] %vm545, 0.0
        %563 = vst.msk [vmem:[#allocation3 + $0x8] sm:$0xff] %vm545, 0.0
        %564 = vst.msk [vmem:[#allocation3 + $0x10] sm:$0xff] %vm545, 0.0
        %565 = vst.msk [vmem:[#allocation3 + $0x18] sm:$0xff] %vm545, 0.0
        %566 = vst.msk [vmem:[#allocation3 + $0x20] sm:$0xff] %vm545, 0.0
        %567 = vst.msk [vmem:[#allocation3 + $0x28] sm:$0xff] %vm545, 0.0
        %568 = vst.msk [vmem:[#allocation3 + $0x30] sm:$0xff] %vm545, 0.0
        %569 = vst.msk [vmem:[#allocation3 + $0x38] sm:$0xff] %vm545, 0.0
        %570 = vst.msk [vmem:[#allocation3 + $0x40] sm:$0xff] %vm545, 0.0
        %571 = vst.msk [vmem:[#allocation3 + $0x48] sm:$0xff] %vm545, 0.0
        %572 = vst.msk [vmem:[#allocation3 + $0x50] sm:$0xff] %vm545, 0.0
        %573 = vst.msk [vmem:[#allocation3 + $0x58] sm:$0xff] %vm545, 0.0
        %574 = vst.msk [vmem:[#allocation3 + $0x60] sm:$0xff] %vm545, 0.0
        %575 = vst.msk [vmem:[#allocation3 + $0x68] sm:$0xff] %vm545, 0.0
        %576 = vst.msk [vmem:[#allocation3 + $0x70] sm:$0xff] %vm545, 0.0
        %577 = vst.msk [vmem:[#allocation3 + $0x78] sm:$0xff] %vm545, 0.0
      $region40: #{decoder_track_a_forward.2} parent=35 // pred_fallthru
        _
      // Predicated region
      $region41: #{decoder_track_a_forward.2} parent=35 // pred_check
        %p578 = pneg %p540
      $region42: #{decoder_track_a_forward.2} parent=35 // pred_check_branch
        %580 = sbr.rel (%p578) target = $region44
      $region43: #{decoder_track_a_forward.2} parent=35 // pred_region
        %v581 = vld [vmem:[#allocation2] sm:$0xff]
        %v582 = vld [vmem:[#allocation2 + $0x8] sm:$0xff]
        %v583 = vld [vmem:[#allocation2 + $0x10] sm:$0xff]
        %v584 = vld [vmem:[#allocation2 + $0x18] sm:$0xff]
        %v585 = vld [vmem:[#allocation2 + $0x20] sm:$0xff]
        %v586 = vld [vmem:[#allocation2 + $0x28] sm:$0xff]
        %v587 = vld [vmem:[#allocation2 + $0x30] sm:$0xff]
        %v588 = vld [vmem:[#allocation2 + $0x38] sm:$0xff]
        %v589 = vld [vmem:[#allocation2 + $0x40] sm:$0xff]
        %v590 = vld [vmem:[#allocation2 + $0x48] sm:$0xff]
        %v591 = vld [vmem:[#allocation2 + $0x50] sm:$0xff]
        %v592 = vld [vmem:[#allocation2 + $0x58] sm:$0xff]
        %v593 = vld [vmem:[#allocation2 + $0x60] sm:$0xff]
        %v594 = vld [vmem:[#allocation2 + $0x68] sm:$0xff]
        %v595 = vld [vmem:[#allocation2 + $0x70] sm:$0xff]
        %v596 = vld [vmem:[#allocation2 + $0x78] sm:$0xff]
        %v597 = vadd.f32 %v446, %v448
        %598 = vadd.xlane.f32.xlu0 %v597
        %v599 = vpop.xlane.xlu0 %598
        %v600 = vadd.f32 %v452, %v454
        %601 = vadd.xlane.f32.xlu0 %v600
        %v602 = vpop.xlane.xlu0 %601
        %v603 = vadd.f32 %v458, %v460
        %604 = vadd.xlane.f32.xlu0 %v603
        %v605 = vpop.xlane.xlu0 %604
        %v606 = vadd.f32 %v464, %v466
        %607 = vadd.xlane.f32.xlu0 %v606
        %v608 = vpop.xlane.xlu0 %607
        %v609 = vadd.f32 %v470, %v472
        %610 = vadd.xlane.f32.xlu0 %v609
        %v611 = vpop.xlane.xlu0 %610
        %v612 = vadd.f32 %v476, %v478
        %613 = vadd.xlane.f32.xlu0 %v612
        %v614 = vpop.xlane.xlu0 %613
        %v615 = vadd.f32 %v482, %v484
        %616 = vadd.xlane.f32.xlu0 %v615
        %v617 = vpop.xlane.xlu0 %616
        %v618 = vadd.f32 %v488, %v490
        %619 = vadd.xlane.f32.xlu0 %v618
        %v620 = vpop.xlane.xlu0 %619
        %v621 = vadd.f32 %v494, %v496
        %622 = vadd.xlane.f32.xlu0 %v621
        %v623 = vpop.xlane.xlu0 %622
        %v624 = vadd.f32 %v500, %v502
        %625 = vadd.xlane.f32.xlu0 %v624
        %v626 = vpop.xlane.xlu0 %625
        %v627 = vadd.f32 %v506, %v508
        %628 = vadd.xlane.f32.xlu0 %v627
        %v629 = vpop.xlane.xlu0 %628
        %v630 = vadd.f32 %v512, %v514
        %631 = vadd.xlane.f32.xlu0 %v630
        %v632 = vpop.xlane.xlu0 %631
        %v633 = vadd.f32 %v518, %v520
        %634 = vadd.xlane.f32.xlu0 %v633
        %v635 = vpop.xlane.xlu0 %634
        %v636 = vadd.f32 %v524, %v526
        %637 = vadd.xlane.f32.xlu0 %v636
        %v638 = vpop.xlane.xlu0 %637
        %v639 = vadd.f32 %v530, %v532
        %640 = vadd.xlane.f32.xlu0 %v639
        %v641 = vpop.xlane.xlu0 %640
        %v642 = vadd.f32 %v536, %v538
        %643 = vadd.xlane.f32.xlu0 %v642
        %v644 = vpop.xlane.xlu0 %643
        %v645 = vadd.f32 %v581, %v599
        %v646 = vadd.f32 %v582, %v602
        %v647 = vadd.f32 %v583, %v605
        %v648 = vadd.f32 %v584, %v608
        %v649 = vadd.f32 %v585, %v611
        %v650 = vadd.f32 %v586, %v614
        %v651 = vadd.f32 %v587, %v617
        %v652 = vadd.f32 %v588, %v620
        %v653 = vadd.f32 %v589, %v623
        %v654 = vadd.f32 %v590, %v626
        %v655 = vadd.f32 %v591, %v629
        %v656 = vadd.f32 %v592, %v632
        %v657 = vadd.f32 %v593, %v635
        %v658 = vadd.f32 %v594, %v638
        %v659 = vadd.f32 %v595, %v641
        %v660 = vadd.f32 %v596, %v644
        %vm661 = vcmask 7168
        %662 = vst.msk [vmem:[#allocation2] sm:$0xff] %vm661, %v645
        %663 = vst.msk [vmem:[#allocation2 + $0x8] sm:$0xff] %vm661, %v646
        %664 = vst.msk [vmem:[#allocation2 + $0x10] sm:$0xff] %vm661, %v647
        %665 = vst.msk [vmem:[#allocation2 + $0x18] sm:$0xff] %vm661, %v648
        %666 = vst.msk [vmem:[#allocation2 + $0x20] sm:$0xff] %vm661, %v649
        %667 = vst.msk [vmem:[#allocation2 + $0x28] sm:$0xff] %vm661, %v650
        %668 = vst.msk [vmem:[#allocation2 + $0x30] sm:$0xff] %vm661, %v651
        %669 = vst.msk [vmem:[#allocation2 + $0x38] sm:$0xff] %vm661, %v652
        %670 = vst.msk [vmem:[#allocation2 + $0x40] sm:$0xff] %vm661, %v653
        %671 = vst.msk [vmem:[#allocation2 + $0x48] sm:$0xff] %vm661, %v654
        %672 = vst.msk [vmem:[#allocation2 + $0x50] sm:$0xff] %vm661, %v655
        %673 = vst.msk [vmem:[#allocation2 + $0x58] sm:$0xff] %vm661, %v656
        %674 = vst.msk [vmem:[#allocation2 + $0x60] sm:$0xff] %vm661, %v657
        %675 = vst.msk [vmem:[#allocation2 + $0x68] sm:$0xff] %vm661, %v658
        %676 = vst.msk [vmem:[#allocation2 + $0x70] sm:$0xff] %vm661, %v659
        %677 = vst.msk [vmem:[#allocation2 + $0x78] sm:$0xff] %vm661, %v660
        %v678 = vld [vmem:[#allocation3] sm:$0xff]
        %v679 = vld [vmem:[#allocation3 + $0x8] sm:$0xff]
        %v680 = vld [vmem:[#allocation3 + $0x10] sm:$0xff]
        %v681 = vld [vmem:[#allocation3 + $0x18] sm:$0xff]
        %v682 = vld [vmem:[#allocation3 + $0x20] sm:$0xff]
        %v683 = vld [vmem:[#allocation3 + $0x28] sm:$0xff]
        %v684 = vld [vmem:[#allocation3 + $0x30] sm:$0xff]
        %v685 = vld [vmem:[#allocation3 + $0x38] sm:$0xff]
        %v686 = vld [vmem:[#allocation3 + $0x40] sm:$0xff]
        %v687 = vld [vmem:[#allocation3 + $0x48] sm:$0xff]
        %v688 = vld [vmem:[#allocation3 + $0x50] sm:$0xff]
        %v689 = vld [vmem:[#allocation3 + $0x58] sm:$0xff]
        %v690 = vld [vmem:[#allocation3 + $0x60] sm:$0xff]
        %v691 = vld [vmem:[#allocation3 + $0x68] sm:$0xff]
        %v692 = vld [vmem:[#allocation3 + $0x70] sm:$0xff]
        %v693 = vld [vmem:[#allocation3 + $0x78] sm:$0xff]
        %v694 = vmul.f32 %v446, %v446
        %v695 = vmul.f32 %v448, %v448
        %v696 = vmul.f32 %v452, %v452
        %v697 = vmul.f32 %v454, %v454
        %v698 = vmul.f32 %v458, %v458
        %v699 = vmul.f32 %v460, %v460
        %v700 = vmul.f32 %v464, %v464
        %v701 = vmul.f32 %v466, %v466
        %v702 = vmul.f32 %v470, %v470
        %v703 = vmul.f32 %v472, %v472
        %v704 = vmul.f32 %v476, %v476
        %v705 = vmul.f32 %v478, %v478
        %v706 = vmul.f32 %v482, %v482
        %v707 = vmul.f32 %v484, %v484
        %v708 = vmul.f32 %v488, %v488
        %v709 = vmul.f32 %v490, %v490
        %v710 = vmul.f32 %v494, %v494
        %v711 = vmul.f32 %v496, %v496
        %v712 = vmul.f32 %v500, %v500
        %v713 = vmul.f32 %v502, %v502
        %v714 = vmul.f32 %v506, %v506
        %v715 = vmul.f32 %v508, %v508
        %v716 = vmul.f32 %v512, %v512
        %v717 = vmul.f32 %v514, %v514
        %v718 = vmul.f32 %v518, %v518
        %v719 = vmul.f32 %v520, %v520
        %v720 = vmul.f32 %v524, %v524
        %v721 = vmul.f32 %v526, %v526
        %v722 = vmul.f32 %v530, %v530
        %v723 = vmul.f32 %v532, %v532
        %v724 = vmul.f32 %v536, %v536
        %v725 = vmul.f32 %v538, %v538
        %v726 = vadd.f32 %v694, %v695
        %727 = vadd.xlane.f32.xlu0 %v726
        %v728 = vpop.xlane.xlu0 %727
        %v729 = vadd.f32 %v696, %v697
        %730 = vadd.xlane.f32.xlu0 %v729
        %v731 = vpop.xlane.xlu0 %730
        %v732 = vadd.f32 %v698, %v699
        %733 = vadd.xlane.f32.xlu0 %v732
        %v734 = vpop.xlane.xlu0 %733
        %v735 = vadd.f32 %v700, %v701
        %736 = vadd.xlane.f32.xlu0 %v735
        %v737 = vpop.xlane.xlu0 %736
        %v738 = vadd.f32 %v702, %v703
        %739 = vadd.xlane.f32.xlu0 %v738
        %v740 = vpop.xlane.xlu0 %739
        %v741 = vadd.f32 %v704, %v705
        %742 = vadd.xlane.f32.xlu0 %v741
        %v743 = vpop.xlane.xlu0 %742
        %v744 = vadd.f32 %v706, %v707
        %745 = vadd.xlane.f32.xlu0 %v744
        %v746 = vpop.xlane.xlu0 %745
        %v747 = vadd.f32 %v708, %v709
        %748 = vadd.xlane.f32.xlu0 %v747
        %v749 = vpop.xlane.xlu0 %748
        %v750 = vadd.f32 %v710, %v711
        %751 = vadd.xlane.f32.xlu0 %v750
        %v752 = vpop.xlane.xlu0 %751
        %v753 = vadd.f32 %v712, %v713
        %754 = vadd.xlane.f32.xlu0 %v753
        %v755 = vpop.xlane.xlu0 %754
        %v756 = vadd.f32 %v714, %v715
        %757 = vadd.xlane.f32.xlu0 %v756
        %v758 = vpop.xlane.xlu0 %757
        %v759 = vadd.f32 %v716, %v717
        %760 = vadd.xlane.f32.xlu0 %v759
        %v761 = vpop.xlane.xlu0 %760
        %v762 = vadd.f32 %v718, %v719
        %763 = vadd.xlane.f32.xlu0 %v762
        %v764 = vpop.xlane.xlu0 %763
        %v765 = vadd.f32 %v720, %v721
        %766 = vadd.xlane.f32.xlu0 %v765
        %v767 = vpop.xlane.xlu0 %766
        %v768 = vadd.f32 %v722, %v723
        %769 = vadd.xlane.f32.xlu0 %v768
        %v770 = vpop.xlane.xlu0 %769
        %v771 = vadd.f32 %v724, %v725
        %772 = vadd.xlane.f32.xlu0 %v771
        %v773 = vpop.xlane.xlu0 %772
        %v774 = vadd.f32 %v678, %v728
        %v775 = vadd.f32 %v679, %v731
        %v776 = vadd.f32 %v680, %v734
        %v777 = vadd.f32 %v681, %v737
        %v778 = vadd.f32 %v682, %v740
        %v779 = vadd.f32 %v683, %v743
        %v780 = vadd.f32 %v684, %v746
        %v781 = vadd.f32 %v685, %v749
        %v782 = vadd.f32 %v686, %v752
        %v783 = vadd.f32 %v687, %v755
        %v784 = vadd.f32 %v688, %v758
        %v785 = vadd.f32 %v689, %v761
        %v786 = vadd.f32 %v690, %v764
        %v787 = vadd.f32 %v691, %v767
        %v788 = vadd.f32 %v692, %v770
        %v789 = vadd.f32 %v693, %v773
        %790 = vst.msk [vmem:[#allocation3] sm:$0xff] %vm661, %v774
        %791 = vst.msk [vmem:[#allocation3 + $0x8] sm:$0xff] %vm661, %v775
        %792 = vst.msk [vmem:[#allocation3 + $0x10] sm:$0xff] %vm661, %v776
        %793 = vst.msk [vmem:[#allocation3 + $0x18] sm:$0xff] %vm661, %v777
        %794 = vst.msk [vmem:[#allocation3 + $0x20] sm:$0xff] %vm661, %v778
        %795 = vst.msk [vmem:[#allocation3 + $0x28] sm:$0xff] %vm661, %v779
        %796 = vst.msk [vmem:[#allocation3 + $0x30] sm:$0xff] %vm661, %v780
        %797 = vst.msk [vmem:[#allocation3 + $0x38] sm:$0xff] %vm661, %v781
        %798 = vst.msk [vmem:[#allocation3 + $0x40] sm:$0xff] %vm661, %v782
        %799 = vst.msk [vmem:[#allocation3 + $0x48] sm:$0xff] %vm661, %v783
        %800 = vst.msk [vmem:[#allocation3 + $0x50] sm:$0xff] %vm661, %v784
        %801 = vst.msk [vmem:[#allocation3 + $0x58] sm:$0xff] %vm661, %v785
        %802 = vst.msk [vmem:[#allocation3 + $0x60] sm:$0xff] %vm661, %v786
        %803 = vst.msk [vmem:[#allocation3 + $0x68] sm:$0xff] %vm661, %v787
        %804 = vst.msk [vmem:[#allocation3 + $0x70] sm:$0xff] %vm661, %v788
        %805 = vst.msk [vmem:[#allocation3 + $0x78] sm:$0xff] %vm661, %v789
      $region44: #{decoder_track_a_forward.2} parent=35 // pred_fallthru
        _
      %p806 = scmp.eq.s32.totalorder %s22, 1
      %p807 = pnand %p806, %p282
      %p808 = pneg %p807
      // Predicated region
      $region45: #{decoder_track_a_forward.2} parent=35 // pred_check
        _
      $region46: #{decoder_track_a_forward.2} parent=35 // pred_check_branch
        %810 = sbr.rel (%p807) target = $region48
      $region47: #{decoder_track_a_forward.2} parent=35 // pred_region
        %v811 = vld [vmem:[#allocation2] sm:$0xff]
        %v812 = vld [vmem:[#allocation2 + $0x8] sm:$0xff]
        %v813 = vld [vmem:[#allocation2 + $0x10] sm:$0xff]
        %v814 = vld [vmem:[#allocation2 + $0x18] sm:$0xff]
        %v815 = vld [vmem:[#allocation2 + $0x20] sm:$0xff]
        %v816 = vld [vmem:[#allocation2 + $0x28] sm:$0xff]
        %v817 = vld [vmem:[#allocation2 + $0x30] sm:$0xff]
        %v818 = vld [vmem:[#allocation2 + $0x38] sm:$0xff]
        %v819 = vld [vmem:[#allocation2 + $0x40] sm:$0xff]
        %v820 = vld [vmem:[#allocation2 + $0x48] sm:$0xff]
        %v821 = vld [vmem:[#allocation2 + $0x50] sm:$0xff]
        %v822 = vld [vmem:[#allocation2 + $0x58] sm:$0xff]
        %v823 = vld [vmem:[#allocation2 + $0x60] sm:$0xff]
        %v824 = vld [vmem:[#allocation2 + $0x68] sm:$0xff]
        %v825 = vld [vmem:[#allocation2 + $0x70] sm:$0xff]
        %v826 = vld [vmem:[#allocation2 + $0x78] sm:$0xff]
        %v827 = vmul.f32 %v811, 0.0015432099
        %v828 = vmul.f32 %v812, 0.0015432099
        %v829 = vmul.f32 %v813, 0.0015432099
        %v830 = vmul.f32 %v814, 0.0015432099
        %v831 = vmul.f32 %v815, 0.0015432099
        %v832 = vmul.f32 %v816, 0.0015432099
        %v833 = vmul.f32 %v817, 0.0015432099
        %v834 = vmul.f32 %v818, 0.0015432099
        %v835 = vmul.f32 %v819, 0.0015432099
        %v836 = vmul.f32 %v820, 0.0015432099
        %v837 = vmul.f32 %v821, 0.0015432099
        %v838 = vmul.f32 %v822, 0.0015432099
        %v839 = vmul.f32 %v823, 0.0015432099
        %v840 = vmul.f32 %v824, 0.0015432099
        %v841 = vmul.f32 %v825, 0.0015432099
        %v842 = vmul.f32 %v826, 0.0015432099
        %v843 = vld [vmem:[#allocation3] sm:$0xff]
        %v844 = vld [vmem:[#allocation3 + $0x8] sm:$0xff]
        %v845 = vld [vmem:[#allocation3 + $0x10] sm:$0xff]
        %v846 = vld [vmem:[#allocation3 + $0x18] sm:$0xff]
        %v847 = vld [vmem:[#allocation3 + $0x20] sm:$0xff]
        %v848 = vld [vmem:[#allocation3 + $0x28] sm:$0xff]
        %v849 = vld [vmem:[#allocation3 + $0x30] sm:$0xff]
        %v850 = vld [vmem:[#allocation3 + $0x38] sm:$0xff]
        %v851 = vld [vmem:[#allocation3 + $0x40] sm:$0xff]
        %v852 = vld [vmem:[#allocation3 + $0x48] sm:$0xff]
        %v853 = vld [vmem:[#allocation3 + $0x50] sm:$0xff]
        %v854 = vld [vmem:[#allocation3 + $0x58] sm:$0xff]
        %v855 = vld [vmem:[#allocation3 + $0x60] sm:$0xff]
        %v856 = vld [vmem:[#allocation3 + $0x68] sm:$0xff]
        %v857 = vld [vmem:[#allocation3 + $0x70] sm:$0xff]
        %v858 = vld [vmem:[#allocation3 + $0x78] sm:$0xff]
        %v859 = vmul.f32 %v843, 0.0015432099
        %v860 = vmul.f32 %v844, 0.0015432099
        %v861 = vmul.f32 %v845, 0.0015432099
        %v862 = vmul.f32 %v846, 0.0015432099
        %v863 = vmul.f32 %v847, 0.0015432099
        %v864 = vmul.f32 %v848, 0.0015432099
        %v865 = vmul.f32 %v849, 0.0015432099
        %v866 = vmul.f32 %v850, 0.0015432099
        %v867 = vmul.f32 %v851, 0.0015432099
        %v868 = vmul.f32 %v852, 0.0015432099
        %v869 = vmul.f32 %v853, 0.0015432099
        %v870 = vmul.f32 %v854, 0.0015432099
        %v871 = vmul.f32 %v855, 0.0015432099
        %v872 = vmul.f32 %v856, 0.0015432099
        %v873 = vmul.f32 %v857, 0.0015432099
        %v874 = vmul.f32 %v858, 0.0015432099
        %v875 = vmul.f32 %v827, %v827
        %v876 = vmul.f32 %v828, %v828
        %v877 = vmul.f32 %v829, %v829
        %v878 = vmul.f32 %v830, %v830
        %v879 = vmul.f32 %v831, %v831
        %v880 = vmul.f32 %v832, %v832
        %v881 = vmul.f32 %v833, %v833
        %v882 = vmul.f32 %v834, %v834
        %v883 = vmul.f32 %v835, %v835
        %v884 = vmul.f32 %v836, %v836
        %v885 = vmul.f32 %v837, %v837
        %v886 = vmul.f32 %v838, %v838
        %v887 = vmul.f32 %v839, %v839
        %v888 = vmul.f32 %v840, %v840
        %v889 = vmul.f32 %v841, %v841
        %v890 = vmul.f32 %v842, %v842
        %v891 = vsub.f32 %v859, %v875
        %v892 = vsub.f32 %v860, %v876
        %v893 = vsub.f32 %v861, %v877
        %v894 = vsub.f32 %v862, %v878
        %v895 = vsub.f32 %v863, %v879
        %v896 = vsub.f32 %v864, %v880
        %v897 = vsub.f32 %v865, %v881
        %v898 = vsub.f32 %v866, %v882
        %v899 = vsub.f32 %v867, %v883
        %v900 = vsub.f32 %v868, %v884
        %v901 = vsub.f32 %v869, %v885
        %v902 = vsub.f32 %v870, %v886
        %v903 = vsub.f32 %v871, %v887
        %v904 = vsub.f32 %v872, %v888
        %v905 = vsub.f32 %v873, %v889
        %v906 = vsub.f32 %v874, %v890
        %v907 = vld [vmem:[%s2] sm:$0xff]
        %v908 = vld [vmem:[%s2 + $0x8] sm:$0xff]
        %v909 = vld [vmem:[%s2 + $0x10] sm:$0xff]
        %v910 = vld [vmem:[%s2 + $0x18] sm:$0xff]
        %v911 = vld [vmem:[%s2 + $0x20] sm:$0xff]
        %v912 = vld [vmem:[%s2 + $0x28] sm:$0xff]
        %v913 = vld [vmem:[%s2 + $0x30] sm:$0xff]
        %v914 = vld [vmem:[%s2 + $0x38] sm:$0xff]
        %v915 = vld [vmem:[%s2 + $0x40] sm:$0xff]
        %v916 = vld [vmem:[%s2 + $0x48] sm:$0xff]
        %v917 = vld [vmem:[%s2 + $0x50] sm:$0xff]
        %v918 = vld [vmem:[%s2 + $0x58] sm:$0xff]
        %v919 = vld [vmem:[%s2 + $0x60] sm:$0xff]
        %v920 = vld [vmem:[%s2 + $0x68] sm:$0xff]
        %v921 = vld [vmem:[%s2 + $0x70] sm:$0xff]
        %v922 = vld [vmem:[%s2 + $0x78] sm:$0xff]
        %v923 = vadd.f32 %v891, 0.001
        %v924 = vadd.f32 %v892, 0.001
        %v925 = vadd.f32 %v893, 0.001
        %v926 = vadd.f32 %v894, 0.001
        %v927 = vadd.f32 %v895, 0.001
        %v928 = vadd.f32 %v896, 0.001
        %v929 = vadd.f32 %v897, 0.001
        %v930 = vadd.f32 %v898, 0.001
        %v931 = vadd.f32 %v899, 0.001
        %v932 = vadd.f32 %v900, 0.001
        %v933 = vadd.f32 %v901, 0.001
        %v934 = vadd.f32 %v902, 0.001
        %v935 = vadd.f32 %v903, 0.001
        %v936 = vadd.f32 %v904, 0.001
        %v937 = vadd.f32 %v905, 0.001
        %v938 = vadd.f32 %v906, 0.001
        %v939 = vrsqrt.pop %v923
        %v940 = vrsqrt.pop %v924
        %v941 = vrsqrt.pop %v925
        %v942 = vrsqrt.pop %v926
        %v943 = vrsqrt.pop %v927
        %v944 = vrsqrt.pop %v928
        %v945 = vrsqrt.pop %v929
        %v946 = vrsqrt.pop %v930
        %v947 = vrsqrt.pop %v931
        %v948 = vrsqrt.pop %v932
        %v949 = vrsqrt.pop %v933
        %v950 = vrsqrt.pop %v934
        %v951 = vrsqrt.pop %v935
        %v952 = vrsqrt.pop %v936
        %v953 = vrsqrt.pop %v937
        %v954 = vrsqrt.pop %v938
        %v955 = vmul.f32 %v907, %v939
        %v956 = vmul.f32 %v908, %v940
        %v957 = vmul.f32 %v909, %v941
        %v958 = vmul.f32 %v910, %v942
        %v959 = vmul.f32 %v911, %v943
        %v960 = vmul.f32 %v912, %v944
        %v961 = vmul.f32 %v913, %v945
        %v962 = vmul.f32 %v914, %v946
        %v963 = vmul.f32 %v915, %v947
        %v964 = vmul.f32 %v916, %v948
        %v965 = vmul.f32 %v917, %v949
        %v966 = vmul.f32 %v918, %v950
        %v967 = vmul.f32 %v919, %v951
        %v968 = vmul.f32 %v920, %v952
        %v969 = vmul.f32 %v921, %v953
        %v970 = vmul.f32 %v922, %v954
        %vm971 = vcmask 7168
        %972 = vst.msk [vmem:[#allocation4] sm:$0xff] %vm971, %v955
        %973 = vst.msk [vmem:[#allocation4 + $0x8] sm:$0xff] %vm971, %v956
        %974 = vst.msk [vmem:[#allocation4 + $0x10] sm:$0xff] %vm971, %v957
        %975 = vst.msk [vmem:[#allocation4 + $0x18] sm:$0xff] %vm971, %v958
        %976 = vst.msk [vmem:[#allocation4 + $0x20] sm:$0xff] %vm971, %v959
        %977 = vst.msk [vmem:[#allocation4 + $0x28] sm:$0xff] %vm971, %v960
        %978 = vst.msk [vmem:[#allocation4 + $0x30] sm:$0xff] %vm971, %v961
        %979 = vst.msk [vmem:[#allocation4 + $0x38] sm:$0xff] %vm971, %v962
        %980 = vst.msk [vmem:[#allocation4 + $0x40] sm:$0xff] %vm971, %v963
        %981 = vst.msk [vmem:[#allocation4 + $0x48] sm:$0xff] %vm971, %v964
        %982 = vst.msk [vmem:[#allocation4 + $0x50] sm:$0xff] %vm971, %v965
        %983 = vst.msk [vmem:[#allocation4 + $0x58] sm:$0xff] %vm971, %v966
        %984 = vst.msk [vmem:[#allocation4 + $0x60] sm:$0xff] %vm971, %v967
        %985 = vst.msk [vmem:[#allocation4 + $0x68] sm:$0xff] %vm971, %v968
        %986 = vst.msk [vmem:[#allocation4 + $0x70] sm:$0xff] %vm971, %v969
        %987 = vst.msk [vmem:[#allocation4 + $0x78] sm:$0xff] %vm971, %v970
        %v988 = vld [vmem:[%s2] sm:$0xff]
        %v989 = vld [vmem:[%s2 + $0x8] sm:$0xff]
        %v990 = vld [vmem:[%s2 + $0x10] sm:$0xff]
        %v991 = vld [vmem:[%s2 + $0x18] sm:$0xff]
        %v992 = vld [vmem:[%s2 + $0x20] sm:$0xff]
        %v993 = vld [vmem:[%s2 + $0x28] sm:$0xff]
        %v994 = vld [vmem:[%s2 + $0x30] sm:$0xff]
        %v995 = vld [vmem:[%s2 + $0x38] sm:$0xff]
        %v996 = vld [vmem:[%s2 + $0x40] sm:$0xff]
        %v997 = vld [vmem:[%s2 + $0x48] sm:$0xff]
        %v998 = vld [vmem:[%s2 + $0x50] sm:$0xff]
        %v999 = vld [vmem:[%s2 + $0x58] sm:$0xff]
        %v1000 = vld [vmem:[%s2 + $0x60] sm:$0xff]
        %v1001 = vld [vmem:[%s2 + $0x68] sm:$0xff]
        %v1002 = vld [vmem:[%s2 + $0x70] sm:$0xff]
        %v1003 = vld [vmem:[%s2 + $0x78] sm:$0xff]
        %v1004 = vmul.f32 %v827, %v955
        %v1005 = vmul.f32 %v828, %v956
        %v1006 = vmul.f32 %v829, %v957
        %v1007 = vmul.f32 %v830, %v958
        %v1008 = vmul.f32 %v831, %v959
        %v1009 = vmul.f32 %v832, %v960
        %v1010 = vmul.f32 %v833, %v961
        %v1011 = vmul.f32 %v834, %v962
        %v1012 = vmul.f32 %v835, %v963
        %v1013 = vmul.f32 %v836, %v964
        %v1014 = vmul.f32 %v837, %v965
        %v1015 = vmul.f32 %v838, %v966
        %v1016 = vmul.f32 %v839, %v967
        %v1017 = vmul.f32 %v840, %v968
        %v1018 = vmul.f32 %v841, %v969
        %v1019 = vmul.f32 %v842, %v970
        %1036 = vrot.lane.b32.xlu0 %v1004, 1
        %v1037 = vpop.permute.xlu0 %1036
        %1038 = vrot.lane.b32.xlu0 %v1005, 1
        %v1039 = vpop.permute.xlu0 %1038
        %1040 = vrot.lane.b32.xlu0 %v1006, 1
        %v1041 = vpop.permute.xlu0 %1040
        %1042 = vrot.lane.b32.xlu0 %v1007, 1
        %v1043 = vpop.permute.xlu0 %1042
        %1044 = vrot.lane.b32.xlu0 %v1008, 1
        %v1045 = vpop.permute.xlu0 %1044
        %1046 = vrot.lane.b32.xlu0 %v1009, 1
        %v1047 = vpop.permute.xlu0 %1046
        %1048 = vrot.lane.b32.xlu0 %v1010, 1
        %v1049 = vpop.permute.xlu0 %1048
        %1050 = vrot.lane.b32.xlu0 %v1011, 1
        %v1051 = vpop.permute.xlu0 %1050
        %1052 = vrot.lane.b32.xlu0 %v1012, 1
        %v1053 = vpop.permute.xlu0 %1052
        %1054 = vrot.lane.b32.xlu0 %v1013, 1
        %v1055 = vpop.permute.xlu0 %1054
        %1056 = vrot.lane.b32.xlu0 %v1014, 1
        %v1057 = vpop.permute.xlu0 %1056
        %1058 = vrot.lane.b32.xlu0 %v1015, 1
        %v1059 = vpop.permute.xlu0 %1058
        %1060 = vrot.lane.b32.xlu0 %v1016, 1
        %v1061 = vpop.permute.xlu0 %1060
        %1062 = vrot.lane.b32.xlu0 %v1017, 1
        %v1063 = vpop.permute.xlu0 %1062
        %1064 = vrot.lane.b32.xlu0 %v1018, 1
        %v1065 = vpop.permute.xlu0 %1064
        %1066 = vrot.lane.b32.xlu0 %v1019, 1
        %v1067 = vpop.permute.xlu0 %1066
        %v1084 = vsub.f32 %v988, %v1037
        %v1085 = vsub.f32 %v989, %v1039
        %v1086 = vsub.f32 %v990, %v1041
        %v1087 = vsub.f32 %v991, %v1043
        %v1088 = vsub.f32 %v992, %v1045
        %v1089 = vsub.f32 %v993, %v1047
        %v1090 = vsub.f32 %v994, %v1049
        %v1091 = vsub.f32 %v995, %v1051
        %v1092 = vsub.f32 %v996, %v1053
        %v1093 = vsub.f32 %v997, %v1055
        %v1094 = vsub.f32 %v998, %v1057
        %v1095 = vsub.f32 %v999, %v1059
        %v1096 = vsub.f32 %v1000, %v1061
        %v1097 = vsub.f32 %v1001, %v1063
        %v1098 = vsub.f32 %v1002, %v1065
        %v1099 = vsub.f32 %v1003, %v1067
        %1116 = vrot.lane.b32.xlu0 %v1084, 127
        %v1117 = vpop.permute.xlu0 %1116
        %1118 = vrot.lane.b32.xlu0 %v1085, 127
        %v1119 = vpop.permute.xlu0 %1118
        %1120 = vrot.lane.b32.xlu0 %v1086, 127
        %v1121 = vpop.permute.xlu0 %1120
        %1122 = vrot.lane.b32.xlu0 %v1087, 127
        %v1123 = vpop.permute.xlu0 %1122
        %1124 = vrot.lane.b32.xlu0 %v1088, 127
        %v1125 = vpop.permute.xlu0 %1124
        %1126 = vrot.lane.b32.xlu0 %v1089, 127
        %v1127 = vpop.permute.xlu0 %1126
        %1128 = vrot.lane.b32.xlu0 %v1090, 127
        %v1129 = vpop.permute.xlu0 %1128
        %1130 = vrot.lane.b32.xlu0 %v1091, 127
        %v1131 = vpop.permute.xlu0 %1130
        %1132 = vrot.lane.b32.xlu0 %v1092, 127
        %v1133 = vpop.permute.xlu0 %1132
        %1134 = vrot.lane.b32.xlu0 %v1093, 127
        %v1135 = vpop.permute.xlu0 %1134
        %1136 = vrot.lane.b32.xlu0 %v1094, 127
        %v1137 = vpop.permute.xlu0 %1136
        %1138 = vrot.lane.b32.xlu0 %v1095, 127
        %v1139 = vpop.permute.xlu0 %1138
        %1140 = vrot.lane.b32.xlu0 %v1096, 127
        %v1141 = vpop.permute.xlu0 %1140
        %1142 = vrot.lane.b32.xlu0 %v1097, 127
        %v1143 = vpop.permute.xlu0 %1142
        %1144 = vrot.lane.b32.xlu0 %v1098, 127
        %v1145 = vpop.permute.xlu0 %1144
        %1146 = vrot.lane.b32.xlu0 %v1099, 127
        %v1147 = vpop.permute.xlu0 %1146
        %1164 = vst.msk [vmem:[#allocation5] sm:$0xff] %vm971, %v1117
        %1165 = vst.msk [vmem:[#allocation5 + $0x8] sm:$0xff] %vm971, %v1119
        %1166 = vst.msk [vmem:[#allocation5 + $0x10] sm:$0xff] %vm971, %v1121
        %1167 = vst.msk [vmem:[#allocation5 + $0x18] sm:$0xff] %vm971, %v1123
        %1168 = vst.msk [vmem:[#allocation5 + $0x20] sm:$0xff] %vm971, %v1125
        %1169 = vst.msk [vmem:[#allocation5 + $0x28] sm:$0xff] %vm971, %v1127
        %1170 = vst.msk [vmem:[#allocation5 + $0x30] sm:$0xff] %vm971, %v1129
        %1171 = vst.msk [vmem:[#allocation5 + $0x38] sm:$0xff] %vm971, %v1131
        %1172 = vst.msk [vmem:[#allocation5 + $0x40] sm:$0xff] %vm971, %v1133
        %1173 = vst.msk [vmem:[#allocation5 + $0x48] sm:$0xff] %vm971, %v1135
        %1174 = vst.msk [vmem:[#allocation5 + $0x50] sm:$0xff] %vm971, %v1137
        %1175 = vst.msk [vmem:[#allocation5 + $0x58] sm:$0xff] %vm971, %v1139
        %1176 = vst.msk [vmem:[#allocation5 + $0x60] sm:$0xff] %vm971, %v1141
        %1177 = vst.msk [vmem:[#allocation5 + $0x68] sm:$0xff] %vm971, %v1143
        %1178 = vst.msk [vmem:[#allocation5 + $0x70] sm:$0xff] %vm971, %v1145
        %1179 = vst.msk [vmem:[#allocation5 + $0x78] sm:$0xff] %vm971, %v1147
        %1180 = vst.msk [vmem:[#allocation6] sm:$0xff] %vm971, 0.0
        %1181 = vst.msk [vmem:[#allocation6 + $0x8] sm:$0xff] %vm971, 0.0
        %1182 = vst.msk [vmem:[#allocation6 + $0x10] sm:$0xff] %vm971, 0.0
        %1183 = vst.msk [vmem:[#allocation6 + $0x18] sm:$0xff] %vm971, 0.0
        %1184 = vst.msk [vmem:[#allocation6 + $0x20] sm:$0xff] %vm971, 0.0
        %1185 = vst.msk [vmem:[#allocation6 + $0x28] sm:$0xff] %vm971, 0.0
        %1186 = vst.msk [vmem:[#allocation6 + $0x30] sm:$0xff] %vm971, 0.0
        %1187 = vst.msk [vmem:[#allocation6 + $0x38] sm:$0xff] %vm971, 0.0
        %1188 = vst.msk [vmem:[#allocation7] sm:$0xff] %vm971, 0.0
        %1189 = vst.msk [vmem:[#allocation7 + $0x8] sm:$0xff] %vm971, 0.0
        %1190 = vst.msk [vmem:[#allocation7 + $0x10] sm:$0xff] %vm971, 0.0
        %1191 = vst.msk [vmem:[#allocation7 + $0x18] sm:$0xff] %vm971, 0.0
        %1192 = vst.msk [vmem:[#allocation7 + $0x20] sm:$0xff] %vm971, 0.0
        %1193 = vst.msk [vmem:[#allocation7 + $0x28] sm:$0xff] %vm971, 0.0
        %1194 = vst.msk [vmem:[#allocation7 + $0x30] sm:$0xff] %vm971, 0.0
        %1195 = vst.msk [vmem:[#allocation7 + $0x38] sm:$0xff] %vm971, 0.0
      $region48: #{decoder_track_a_forward.2} parent=35 // pred_fallthru
        _
      // Predicated region
      $region49: #{decoder_track_a_forward.2} parent=35 // pred_check
        %p1196 = pneg %p806
      $region50: #{decoder_track_a_forward.2} parent=35 // pred_check_branch
        %1198 = sbr.rel (%p1196) target = $region52
      $region51: #{decoder_track_a_forward.2} parent=35 // pred_region
        %v1199 = vld [vmem:[#allocation4] sm:$0xff]
        %v1200 = vld [vmem:[#allocation4 + $0x8] sm:$0xff]
        %v1201 = vld [vmem:[#allocation4 + $0x10] sm:$0xff]
        %v1202 = vld [vmem:[#allocation4 + $0x18] sm:$0xff]
        %v1203 = vld [vmem:[#allocation4 + $0x20] sm:$0xff]
        %v1204 = vld [vmem:[#allocation4 + $0x28] sm:$0xff]
        %v1205 = vld [vmem:[#allocation4 + $0x30] sm:$0xff]
        %v1206 = vld [vmem:[#allocation4 + $0x38] sm:$0xff]
        %v1207 = vld [vmem:[#allocation4 + $0x40] sm:$0xff]
        %v1208 = vld [vmem:[#allocation4 + $0x48] sm:$0xff]
        %v1209 = vld [vmem:[#allocation4 + $0x50] sm:$0xff]
        %v1210 = vld [vmem:[#allocation4 + $0x58] sm:$0xff]
        %v1211 = vld [vmem:[#allocation4 + $0x60] sm:$0xff]
        %v1212 = vld [vmem:[#allocation4 + $0x68] sm:$0xff]
        %v1213 = vld [vmem:[#allocation4 + $0x70] sm:$0xff]
        %v1214 = vld [vmem:[#allocation4 + $0x78] sm:$0xff]
        %1216 = vset.pattern.permute.xlu0 0
        %1217 = vperm.xlu0 %1216, %v1199
        %v1218 = vpop.permute.xlu0 %1217
        %1221 = vset.pattern.permute.xlu0 0
        %1222 = vperm.xlu0 %1221, %v1200
        %v1223 = vpop.permute.xlu0 %1222
        %1226 = vset.pattern.permute.xlu0 0
        %1227 = vperm.xlu0 %1226, %v1201
        %v1228 = vpop.permute.xlu0 %1227
        %1231 = vset.pattern.permute.xlu0 0
        %1232 = vperm.xlu0 %1231, %v1202
        %v1233 = vpop.permute.xlu0 %1232
        %1236 = vset.pattern.permute.xlu0 0
        %1237 = vperm.xlu0 %1236, %v1203
        %v1238 = vpop.permute.xlu0 %1237
        %1241 = vset.pattern.permute.xlu0 0
        %1242 = vperm.xlu0 %1241, %v1204
        %v1243 = vpop.permute.xlu0 %1242
        %1246 = vset.pattern.permute.xlu0 0
        %1247 = vperm.xlu0 %1246, %v1205
        %v1248 = vpop.permute.xlu0 %1247
        %1251 = vset.pattern.permute.xlu0 0
        %1252 = vperm.xlu0 %1251, %v1206
        %v1253 = vpop.permute.xlu0 %1252
        %1256 = vset.pattern.permute.xlu0 0
        %1257 = vperm.xlu0 %1256, %v1207
        %v1258 = vpop.permute.xlu0 %1257
        %1261 = vset.pattern.permute.xlu0 0
        %1262 = vperm.xlu0 %1261, %v1208
        %v1263 = vpop.permute.xlu0 %1262
        %1266 = vset.pattern.permute.xlu0 0
        %1267 = vperm.xlu0 %1266, %v1209
        %v1268 = vpop.permute.xlu0 %1267
        %1271 = vset.pattern.permute.xlu0 0
        %1272 = vperm.xlu0 %1271, %v1210
        %v1273 = vpop.permute.xlu0 %1272
        %1276 = vset.pattern.permute.xlu0 0
        %1277 = vperm.xlu0 %1276, %v1211
        %v1278 = vpop.permute.xlu0 %1277
        %1281 = vset.pattern.permute.xlu0 0
        %1282 = vperm.xlu0 %1281, %v1212
        %v1283 = vpop.permute.xlu0 %1282
        %1286 = vset.pattern.permute.xlu0 0
        %1287 = vperm.xlu0 %1286, %v1213
        %v1288 = vpop.permute.xlu0 %1287
        %1291 = vset.pattern.permute.xlu0 0
        %1292 = vperm.xlu0 %1291, %v1214
        %v1293 = vpop.permute.xlu0 %1292
        %v1295 = vmul.f32 %v446, %v1218
        %v1296 = vmul.f32 %v448, %v1218
        %v1297 = vmul.f32 %v452, %v1223
        %v1298 = vmul.f32 %v454, %v1223
        %v1299 = vmul.f32 %v458, %v1228
        %v1300 = vmul.f32 %v460, %v1228
        %v1301 = vmul.f32 %v464, %v1233
        %v1302 = vmul.f32 %v466, %v1233
        %v1303 = vmul.f32 %v470, %v1238
        %v1304 = vmul.f32 %v472, %v1238
        %v1305 = vmul.f32 %v476, %v1243
        %v1306 = vmul.f32 %v478, %v1243
        %v1307 = vmul.f32 %v482, %v1248
        %v1308 = vmul.f32 %v484, %v1248
        %v1309 = vmul.f32 %v488, %v1253
        %v1310 = vmul.f32 %v490, %v1253
        %v1311 = vmul.f32 %v494, %v1258
        %v1312 = vmul.f32 %v496, %v1258
        %v1313 = vmul.f32 %v500, %v1263
        %v1314 = vmul.f32 %v502, %v1263
        %v1315 = vmul.f32 %v506, %v1268
        %v1316 = vmul.f32 %v508, %v1268
        %v1317 = vmul.f32 %v512, %v1273
        %v1318 = vmul.f32 %v514, %v1273
        %v1319 = vmul.f32 %v518, %v1278
        %v1320 = vmul.f32 %v520, %v1278
        %v1321 = vmul.f32 %v524, %v1283
        %v1322 = vmul.f32 %v526, %v1283
        %v1323 = vmul.f32 %v530, %v1288
        %v1324 = vmul.f32 %v532, %v1288
        %v1325 = vmul.f32 %v536, %v1293
        %v1326 = vmul.f32 %v538, %v1293
        %v1327 = vld [vmem:[#allocation5] sm:$0xff]
        %v1328 = vld [vmem:[#allocation5 + $0x8] sm:$0xff]
        %v1329 = vld [vmem:[#allocation5 + $0x10] sm:$0xff]
        %v1330 = vld [vmem:[#allocation5 + $0x18] sm:$0xff]
        %v1331 = vld [vmem:[#allocation5 + $0x20] sm:$0xff]
        %v1332 = vld [vmem:[#allocation5 + $0x28] sm:$0xff]
        %v1333 = vld [vmem:[#allocation5 + $0x30] sm:$0xff]
        %v1334 = vld [vmem:[#allocation5 + $0x38] sm:$0xff]
        %v1335 = vld [vmem:[#allocation5 + $0x40] sm:$0xff]
        %v1336 = vld [vmem:[#allocation5 + $0x48] sm:$0xff]
        %v1337 = vld [vmem:[#allocation5 + $0x50] sm:$0xff]
        %v1338 = vld [vmem:[#allocation5 + $0x58] sm:$0xff]
        %v1339 = vld [vmem:[#allocation5 + $0x60] sm:$0xff]
        %v1340 = vld [vmem:[#allocation5 + $0x68] sm:$0xff]
        %v1341 = vld [vmem:[#allocation5 + $0x70] sm:$0xff]
        %v1342 = vld [vmem:[#allocation5 + $0x78] sm:$0xff]
        %1344 = vset.pattern.permute.xlu0 0
        %1345 = vperm.xlu0 %1344, %v1327
        %v1346 = vpop.permute.xlu0 %1345
        %1349 = vset.pattern.permute.xlu0 0
        %1350 = vperm.xlu0 %1349, %v1328
        %v1351 = vpop.permute.xlu0 %1350
        %1354 = vset.pattern.permute.xlu0 0
        %1355 = vperm.xlu0 %1354, %v1329
        %v1356 = vpop.permute.xlu0 %1355
        %1359 = vset.pattern.permute.xlu0 0
        %1360 = vperm.xlu0 %1359, %v1330
        %v1361 = vpop.permute.xlu0 %1360
        %1364 = vset.pattern.permute.xlu0 0
        %1365 = vperm.xlu0 %1364, %v1331
        %v1366 = vpop.permute.xlu0 %1365
        %1369 = vset.pattern.permute.xlu0 0
        %1370 = vperm.xlu0 %1369, %v1332
        %v1371 = vpop.permute.xlu0 %1370
        %1374 = vset.pattern.permute.xlu0 0
        %1375 = vperm.xlu0 %1374, %v1333
        %v1376 = vpop.permute.xlu0 %1375
        %1379 = vset.pattern.permute.xlu0 0
        %1380 = vperm.xlu0 %1379, %v1334
        %v1381 = vpop.permute.xlu0 %1380
        %1384 = vset.pattern.permute.xlu0 0
        %1385 = vperm.xlu0 %1384, %v1335
        %v1386 = vpop.permute.xlu0 %1385
        %1389 = vset.pattern.permute.xlu0 0
        %1390 = vperm.xlu0 %1389, %v1336
        %v1391 = vpop.permute.xlu0 %1390
        %1394 = vset.pattern.permute.xlu0 0
        %1395 = vperm.xlu0 %1394, %v1337
        %v1396 = vpop.permute.xlu0 %1395
        %1399 = vset.pattern.permute.xlu0 0
        %1400 = vperm.xlu0 %1399, %v1338
        %v1401 = vpop.permute.xlu0 %1400
        %1404 = vset.pattern.permute.xlu0 0
        %1405 = vperm.xlu0 %1404, %v1339
        %v1406 = vpop.permute.xlu0 %1405
        %1409 = vset.pattern.permute.xlu0 0
        %1410 = vperm.xlu0 %1409, %v1340
        %v1411 = vpop.permute.xlu0 %1410
        %1414 = vset.pattern.permute.xlu0 0
        %1415 = vperm.xlu0 %1414, %v1341
        %v1416 = vpop.permute.xlu0 %1415
        %1419 = vset.pattern.permute.xlu0 0
        %1420 = vperm.xlu0 %1419, %v1342
        %v1421 = vpop.permute.xlu0 %1420
        %v1423 = vadd.f32 %v1295, %v1346
        %v1424 = vadd.f32 %v1296, %v1346
        %v1425 = vadd.f32 %v1297, %v1351
        %v1426 = vadd.f32 %v1298, %v1351
        %v1427 = vadd.f32 %v1299, %v1356
        %v1428 = vadd.f32 %v1300, %v1356
        %v1429 = vadd.f32 %v1301, %v1361
        %v1430 = vadd.f32 %v1302, %v1361
        %v1431 = vadd.f32 %v1303, %v1366
        %v1432 = vadd.f32 %v1304, %v1366
        %v1433 = vadd.f32 %v1305, %v1371
        %v1434 = vadd.f32 %v1306, %v1371
        %v1435 = vadd.f32 %v1307, %v1376
        %v1436 = vadd.f32 %v1308, %v1376
        %v1437 = vadd.f32 %v1309, %v1381
        %v1438 = vadd.f32 %v1310, %v1381
        %v1439 = vadd.f32 %v1311, %v1386
        %v1440 = vadd.f32 %v1312, %v1386
        %v1441 = vadd.f32 %v1313, %v1391
        %v1442 = vadd.f32 %v1314, %v1391
        %v1443 = vadd.f32 %v1315, %v1396
        %v1444 = vadd.f32 %v1316, %v1396
        %v1445 = vadd.f32 %v1317, %v1401
        %v1446 = vadd.f32 %v1318, %v1401
        %v1447 = vadd.f32 %v1319, %v1406
        %v1448 = vadd.f32 %v1320, %v1406
        %v1449 = vadd.f32 %v1321, %v1411
        %v1450 = vadd.f32 %v1322, %v1411
        %v1451 = vadd.f32 %v1323, %v1416
        %v1452 = vadd.f32 %v1324, %v1416
        %v1453 = vadd.f32 %v1325, %v1421
        %v1454 = vadd.f32 %v1326, %v1421
        %v1455 = vmax.f32 %v1423, 0.0
        %v1456 = vmax.f32 %v1424, 0.0
        %v1457 = vmax.f32 %v1425, 0.0
        %v1458 = vmax.f32 %v1426, 0.0
        %v1459 = vmax.f32 %v1427, 0.0
        %v1460 = vmax.f32 %v1428, 0.0
        %v1461 = vmax.f32 %v1429, 0.0
        %v1462 = vmax.f32 %v1430, 0.0
        %v1463 = vmax.f32 %v1431, 0.0
        %v1464 = vmax.f32 %v1432, 0.0
        %v1465 = vmax.f32 %v1433, 0.0
        %v1466 = vmax.f32 %v1434, 0.0
        %v1467 = vmax.f32 %v1435, 0.0
        %v1468 = vmax.f32 %v1436, 0.0
        %v1469 = vmax.f32 %v1437, 0.0
        %v1470 = vmax.f32 %v1438, 0.0
        %v1471 = vmax.f32 %v1439, 0.0
        %v1472 = vmax.f32 %v1440, 0.0
        %v1473 = vmax.f32 %v1441, 0.0
        %v1474 = vmax.f32 %v1442, 0.0
        %v1475 = vmax.f32 %v1443, 0.0
        %v1476 = vmax.f32 %v1444, 0.0
        %v1477 = vmax.f32 %v1445, 0.0
        %v1478 = vmax.f32 %v1446, 0.0
        %v1479 = vmax.f32 %v1447, 0.0
        %v1480 = vmax.f32 %v1448, 0.0
        %v1481 = vmax.f32 %v1449, 0.0
        %v1482 = vmax.f32 %v1450, 0.0
        %v1483 = vmax.f32 %v1451, 0.0
        %v1484 = vmax.f32 %v1452, 0.0
        %v1485 = vmax.f32 %v1453, 0.0
        %v1486 = vmax.f32 %v1454, 0.0
        %v1487 = vld [vmem:[%s3] sm:$0xff]
        %v1488 = vld [vmem:[%s3 + $0x8] sm:$0xff]
        %v1489 = vld [vmem:[%s3 + $0x10] sm:$0xff]
        %v1490 = vld [vmem:[%s3 + $0x18] sm:$0xff]
        %v1491 = vld [vmem:[%s3 + $0x20] sm:$0xff]
        %v1492 = vld [vmem:[%s3 + $0x28] sm:$0xff]
        %v1493 = vld [vmem:[%s3 + $0x30] sm:$0xff]
        %v1494 = vld [vmem:[%s3 + $0x38] sm:$0xff]
        %1495 = vmatprep.subr.mxu0 %v1456
        %1496 = vmatpush1.msra.mxu0 %v1455
        %1497 = vmatprep.subr.mxu0 %v1458
        %1498 = vmatpush1.msra.mxu0 %v1457
        %1499 = vmatprep.subr.mxu0 %v1460
        %1500 = vmatpush1.msra.mxu0 %v1459
        %1501 = vmatprep.subr.mxu0 %v1462
        %1502 = vmatpush1.msra.mxu0 %v1461
        %1503 = vmatprep.subr.mxu0 %v1464
        %1504 = vmatpush1.msra.mxu0 %v1463
        %1505 = vmatprep.subr.mxu0 %v1466
        %1506 = vmatpush1.msra.mxu0 %v1465
        %1507 = vmatprep.subr.mxu0 %v1468
        %1508 = vmatpush1.msra.mxu0 %v1467
        %1509 = vmatprep.subr.mxu0 %v1470
        %1510 = vmatpush1.msra.mxu0 %v1469
        %1511 = vmatprep.subr.mxu0 %v1472
        %1512 = vmatpush1.msra.mxu0 %v1471
        %1513 = vmatprep.subr.mxu0 %v1474
        %1514 = vmatpush1.msra.mxu0 %v1473
        %1515 = vmatprep.subr.mxu0 %v1476
        %1516 = vmatpush1.msra.mxu0 %v1475
        %1517 = vmatprep.subr.mxu0 %v1478
        %1518 = vmatpush1.msra.mxu0 %v1477
        %1519 = vmatprep.subr.mxu0 %v1480
        %1520 = vmatpush1.msra.mxu0 %v1479
        %1521 = vmatprep.subr.mxu0 %v1482
        %1522 = vmatpush1.msra.mxu0 %v1481
        %1523 = vmatprep.subr.mxu0 %v1484
        %1524 = vmatpush1.msra.mxu0 %v1483
        %1525 = vmatprep.subr.mxu0 %v1486
        %1526 = vmatpush1.msra.mxu0 %v1485
        %1527 = vmatprep.subr.mxu0 0.0
        %1528 = vmatpush1.msra.mxu0 0.0
        %1529 = vmatprep.subr.mxu0 0.0
        %1530 = vmatpush1.msra.mxu0 0.0
        %1531 = vmatprep.subr.mxu0 0.0
        %1532 = vmatpush1.msra.mxu0 0.0
        %1533 = vmatprep.subr.mxu0 0.0
        %1534 = vmatpush1.msra.mxu0 0.0
        %1535 = vmatprep.subr.mxu0 0.0
        %1536 = vmatpush1.msra.mxu0 0.0
        %1537 = vmatprep.subr.mxu0 0.0
        %1538 = vmatpush1.msra.mxu0 0.0
        %1539 = vmatprep.subr.mxu0 0.0
        %1540 = vmatpush1.msra.mxu0 0.0
        %1541 = vmatprep.subr.mxu0 0.0
        %1542 = vmatpush1.msra.mxu0 0.0
        %1543 = vmatprep.subr.mxu0 0.0
        %1544 = vmatpush1.msra.mxu0 0.0
        %1545 = vmatprep.subr.mxu0 0.0
        %1546 = vmatpush1.msra.mxu0 0.0
        %1547 = vmatprep.subr.mxu0 0.0
        %1548 = vmatpush1.msra.mxu0 0.0
        %1549 = vmatprep.subr.mxu0 0.0
        %1550 = vmatpush1.msra.mxu0 0.0
        %1551 = vmatprep.subr.mxu0 0.0
        %1552 = vmatpush1.msra.mxu0 0.0
        %1553 = vmatprep.subr.mxu0 0.0
        %1554 = vmatpush1.msra.mxu0 0.0
        %1555 = vmatprep.subr.mxu0 0.0
        %1556 = vmatpush1.msra.mxu0 0.0
        %1557 = vmatprep.subr.mxu0 0.0
        %1558 = vmatpush1.msra.mxu0 0.0
        %1559 = vmatprep.mubr.f32.mxu0 0.0
        %1560 = vmatmul.mubr.f32.gmra.mrb[0].mxu0 %v1487
        %v1561 = vpop.f32.mrb[0].mxu0
        %v1562 = vadd.f32 0.0, %v1561
        %v1563 = vpop.f32.mrb[0].mxu0
        %v1564 = vadd.f32 0.0, %v1563
        %1565 = vmatprep.mubr.f32.mxu0 0.0
        %1566 = vmatmul.mubr.f32.gmra.mrb[0].mxu0 %v1488
        %v1567 = vpop.f32.mrb[0].mxu0
        %v1568 = vadd.f32 0.0, %v1567
        %v1569 = vpop.f32.mrb[0].mxu0
        %v1570 = vadd.f32 0.0, %v1569
        %1571 = vmatprep.mubr.f32.mxu0 0.0
        %1572 = vmatmul.mubr.f32.gmra.mrb[0].mxu0 %v1489
        %v1573 = vpop.f32.mrb[0].mxu0
        %v1574 = vadd.f32 0.0, %v1573
        %v1575 = vpop.f32.mrb[0].mxu0
        %v1576 = vadd.f32 0.0, %v1575
        %1577 = vmatprep.mubr.f32.mxu0 0.0
        %1578 = vmatmul.mubr.f32.gmra.mrb[0].mxu0 %v1490
        %v1579 = vpop.f32.mrb[0].mxu0
        %v1580 = vadd.f32 0.0, %v1579
        %v1581 = vpop.f32.mrb[0].mxu0
        %v1582 = vadd.f32 0.0, %v1581
        %1583 = vmatprep.mubr.f32.mxu0 0.0
        %1584 = vmatmul.mubr.f32.gmra.mrb[0].mxu0 %v1491
        %v1585 = vpop.f32.mrb[0].mxu0
        %v1586 = vadd.f32 0.0, %v1585
        %v1587 = vpop.f32.mrb[0].mxu0
        %v1588 = vadd.f32 0.0, %v1587
        %1589 = vmatprep.mubr.f32.mxu0 0.0
        %1590 = vmatmul.mubr.f32.gmra.mrb[0].mxu0 %v1492
        %v1591 = vpop.f32.mrb[0].mxu0
        %v1592 = vadd.f32 0.0, %v1591
        %v1593 = vpop.f32.mrb[0].mxu0
        %v1594 = vadd.f32 0.0, %v1593
        %1595 = vmatprep.mubr.f32.mxu0 0.0
        %1596 = vmatmul.mubr.f32.gmra.mrb[0].mxu0 %v1493
        %v1597 = vpop.f32.mrb[0].mxu0
        %v1598 = vadd.f32 0.0, %v1597
        %v1599 = vpop.f32.mrb[0].mxu0
        %v1600 = vadd.f32 0.0, %v1599
        %1601 = vmatprep.mubr.f32.mxu0 0.0
        %1602 = vmatmul.mubr.f32.gmra.mrb[0].mxu0 %v1494
        %v1603 = vpop.f32.mrb[0].mxu0
        %v1604 = vadd.f32 0.0, %v1603
        %v1605 = vpop.f32.mrb[0].mxu0
        %v1606 = vadd.f32 0.0, %v1605
        %1607 = vdwg.mxu0
        %v1608 = vld [vmem:[#allocation6] sm:$0xff]
        %v1609 = vld [vmem:[#allocation6 + $0x8] sm:$0xff]
        %v1610 = vld [vmem:[#allocation6 + $0x10] sm:$0xff]
        %v1611 = vld [vmem:[#allocation6 + $0x18] sm:$0xff]
        %v1612 = vld [vmem:[#allocation6 + $0x20] sm:$0xff]
        %v1613 = vld [vmem:[#allocation6 + $0x28] sm:$0xff]
        %v1614 = vld [vmem:[#allocation6 + $0x30] sm:$0xff]
        %v1615 = vld [vmem:[#allocation6 + $0x38] sm:$0xff]
        %v1616 = vadd.f32 %v1562, %v1564
        %1617 = vadd.xlane.f32.xlu0 %v1616
        %v1618 = vpop.xlane.xlu0 %1617
        %v1619 = vadd.f32 %v1568, %v1570
        %1620 = vadd.xlane.f32.xlu0 %v1619
        %v1621 = vpop.xlane.xlu0 %1620
        %v1622 = vadd.f32 %v1574, %v1576
        %1623 = vadd.xlane.f32.xlu0 %v1622
        %v1624 = vpop.xlane.xlu0 %1623
        %v1625 = vadd.f32 %v1580, %v1582
        %1626 = vadd.xlane.f32.xlu0 %v1625
        %v1627 = vpop.xlane.xlu0 %1626
        %v1628 = vadd.f32 %v1586, %v1588
        %1629 = vadd.xlane.f32.xlu0 %v1628
        %v1630 = vpop.xlane.xlu0 %1629
        %v1631 = vadd.f32 %v1592, %v1594
        %1632 = vadd.xlane.f32.xlu0 %v1631
        %v1633 = vpop.xlane.xlu0 %1632
        %v1634 = vadd.f32 %v1598, %v1600
        %1635 = vadd.xlane.f32.xlu0 %v1634
        %v1636 = vpop.xlane.xlu0 %1635
        %v1637 = vadd.f32 %v1604, %v1606
        %1638 = vadd.xlane.f32.xlu0 %v1637
        %v1639 = vpop.xlane.xlu0 %1638
        %v1640 = vadd.f32 %v1608, %v1618
        %v1641 = vadd.f32 %v1609, %v1621
        %v1642 = vadd.f32 %v1610, %v1624
        %v1643 = vadd.f32 %v1611, %v1627
        %v1644 = vadd.f32 %v1612, %v1630
        %v1645 = vadd.f32 %v1613, %v1633
        %v1646 = vadd.f32 %v1614, %v1636
        %v1647 = vadd.f32 %v1615, %v1639
        %vm1648 = vcmask 7168
        %1649 = vst.msk [vmem:[#allocation6] sm:$0xff] %vm1648, %v1640
        %1650 = vst.msk [vmem:[#allocation6 + $0x8] sm:$0xff] %vm1648, %v1641
        %1651 = vst.msk [vmem:[#allocation6 + $0x10] sm:$0xff] %vm1648, %v1642
        %1652 = vst.msk [vmem:[#allocation6 + $0x18] sm:$0xff] %vm1648, %v1643
        %1653 = vst.msk [vmem:[#allocation6 + $0x20] sm:$0xff] %vm1648, %v1644
        %1654 = vst.msk [vmem:[#allocation6 + $0x28] sm:$0xff] %vm1648, %v1645
        %1655 = vst.msk [vmem:[#allocation6 + $0x30] sm:$0xff] %vm1648, %v1646
        %1656 = vst.msk [vmem:[#allocation6 + $0x38] sm:$0xff] %vm1648, %v1647
        %v1657 = vld [vmem:[#allocation7] sm:$0xff]
        %v1658 = vld [vmem:[#allocation7 + $0x8] sm:$0xff]
        %v1659 = vld [vmem:[#allocation7 + $0x10] sm:$0xff]
        %v1660 = vld [vmem:[#allocation7 + $0x18] sm:$0xff]
        %v1661 = vld [vmem:[#allocation7 + $0x20] sm:$0xff]
        %v1662 = vld [vmem:[#allocation7 + $0x28] sm:$0xff]
        %v1663 = vld [vmem:[#allocation7 + $0x30] sm:$0xff]
        %v1664 = vld [vmem:[#allocation7 + $0x38] sm:$0xff]
        %v1665 = vmul.f32 %v1562, %v1562
        %v1666 = vmul.f32 %v1564, %v1564
        %v1667 = vmul.f32 %v1568, %v1568
        %v1668 = vmul.f32 %v1570, %v1570
        %v1669 = vmul.f32 %v1574, %v1574
        %v1670 = vmul.f32 %v1576, %v1576
        %v1671 = vmul.f32 %v1580, %v1580
        %v1672 = vmul.f32 %v1582, %v1582
        %v1673 = vmul.f32 %v1586, %v1586
        %v1674 = vmul.f32 %v1588, %v1588
        %v1675 = vmul.f32 %v1592, %v1592
        %v1676 = vmul.f32 %v1594, %v1594
        %v1677 = vmul.f32 %v1598, %v1598
        %v1678 = vmul.f32 %v1600, %v1600
        %v1679 = vmul.f32 %v1604, %v1604
        %v1680 = vmul.f32 %v1606, %v1606
        %v1681 = vadd.f32 %v1665, %v1666
        %1682 = vadd.xlane.f32.xlu0 %v1681
        %v1683 = vpop.xlane.xlu0 %1682
        %v1684 = vadd.f32 %v1667, %v1668
        %1685 = vadd.xlane.f32.xlu0 %v1684
        %v1686 = vpop.xlane.xlu0 %1685
        %v1687 = vadd.f32 %v1669, %v1670
        %1688 = vadd.xlane.f32.xlu0 %v1687
        %v1689 = vpop.xlane.xlu0 %1688
        %v1690 = vadd.f32 %v1671, %v1672
        %1691 = vadd.xlane.f32.xlu0 %v1690
        %v1692 = vpop.xlane.xlu0 %1691
        %v1693 = vadd.f32 %v1673, %v1674
        %1694 = vadd.xlane.f32.xlu0 %v1693
        %v1695 = vpop.xlane.xlu0 %1694
        %v1696 = vadd.f32 %v1675, %v1676
        %1697 = vadd.xlane.f32.xlu0 %v1696
        %v1698 = vpop.xlane.xlu0 %1697
        %v1699 = vadd.f32 %v1677, %v1678
        %1700 = vadd.xlane.f32.xlu0 %v1699
        %v1701 = vpop.xlane.xlu0 %1700
        %v1702 = vadd.f32 %v1679, %v1680
        %1703 = vadd.xlane.f32.xlu0 %v1702
        %v1704 = vpop.xlane.xlu0 %1703
        %v1705 = vadd.f32 %v1657, %v1683
        %v1706 = vadd.f32 %v1658, %v1686
        %v1707 = vadd.f32 %v1659, %v1689
        %v1708 = vadd.f32 %v1660, %v1692
        %v1709 = vadd.f32 %v1661, %v1695
        %v1710 = vadd.f32 %v1662, %v1698
        %v1711 = vadd.f32 %v1663, %v1701
        %v1712 = vadd.f32 %v1664, %v1704
        %1713 = vst.msk [vmem:[#allocation7] sm:$0xff] %vm1648, %v1705
        %1714 = vst.msk [vmem:[#allocation7 + $0x8] sm:$0xff] %vm1648, %v1706
        %1715 = vst.msk [vmem:[#allocation7 + $0x10] sm:$0xff] %vm1648, %v1707
        %1716 = vst.msk [vmem:[#allocation7 + $0x18] sm:$0xff] %vm1648, %v1708
        %1717 = vst.msk [vmem:[#allocation7 + $0x20] sm:$0xff] %vm1648, %v1709
        %1718 = vst.msk [vmem:[#allocation7 + $0x28] sm:$0xff] %vm1648, %v1710
        %1719 = vst.msk [vmem:[#allocation7 + $0x30] sm:$0xff] %vm1648, %v1711
        %1720 = vst.msk [vmem:[#allocation7 + $0x38] sm:$0xff] %vm1648, %v1712
        %1721 = vst [vmem:[%s275] sm:$0xff] %v1562
        %1722 = vst [vmem:[%s275 + $0x8] sm:$0xff] %v1564
        %1723 = vst [vmem:[%s275 + $0x10] sm:$0xff] %v1568
        %1724 = vst [vmem:[%s275 + $0x18] sm:$0xff] %v1570
        %1725 = vst [vmem:[%s275 + $0x20] sm:$0xff] %v1574
        %1726 = vst [vmem:[%s275 + $0x28] sm:$0xff] %v1576
        %1727 = vst [vmem:[%s275 + $0x30] sm:$0xff] %v1580
        %1728 = vst [vmem:[%s275 + $0x38] sm:$0xff] %v1582
        %1729 = vst [vmem:[%s275 + $0x40] sm:$0xff] %v1586
        %1730 = vst [vmem:[%s275 + $0x48] sm:$0xff] %v1588
        %1731 = vst [vmem:[%s275 + $0x50] sm:$0xff] %v1592
        %1732 = vst [vmem:[%s275 + $0x58] sm:$0xff] %v1594
        %1733 = vst [vmem:[%s275 + $0x60] sm:$0xff] %v1598
        %1734 = vst [vmem:[%s275 + $0x68] sm:$0xff] %v1600
        %1735 = vst [vmem:[%s275 + $0x70] sm:$0xff] %v1604
        %1736 = vst [vmem:[%s275 + $0x78] sm:$0xff] %v1606
        %v1737 = vld [vmem:[#allocation6] sm:$0xff]
        %v1738 = vld [vmem:[#allocation6 + $0x8] sm:$0xff]
        %v1739 = vld [vmem:[#allocation6 + $0x10] sm:$0xff]
        %v1740 = vld [vmem:[#allocation6 + $0x18] sm:$0xff]
        %v1741 = vld [vmem:[#allocation6 + $0x20] sm:$0xff]
        %v1742 = vld [vmem:[#allocation6 + $0x28] sm:$0xff]
        %v1743 = vld [vmem:[#allocation6 + $0x30] sm:$0xff]
        %v1744 = vld [vmem:[#allocation6 + $0x38] sm:$0xff]
        %1745 = vst.msk [vmem:[%s5] sm:$0xff] %vm1648, %v1737
        %1746 = vst.msk [vmem:[%s5 + $0x8] sm:$0xff] %vm1648, %v1738
        %1747 = vst.msk [vmem:[%s5 + $0x10] sm:$0xff] %vm1648, %v1739
        %1748 = vst.msk [vmem:[%s5 + $0x18] sm:$0xff] %vm1648, %v1740
        %1749 = vst.msk [vmem:[%s5 + $0x20] sm:$0xff] %vm1648, %v1741
        %1750 = vst.msk [vmem:[%s5 + $0x28] sm:$0xff] %vm1648, %v1742
        %1751 = vst.msk [vmem:[%s5 + $0x30] sm:$0xff] %vm1648, %v1743
        %1752 = vst.msk [vmem:[%s5 + $0x38] sm:$0xff] %vm1648, %v1744
        %v1753 = vld [vmem:[#allocation7] sm:$0xff]
        %v1754 = vld [vmem:[#allocation7 + $0x8] sm:$0xff]
        %v1755 = vld [vmem:[#allocation7 + $0x10] sm:$0xff]
        %v1756 = vld [vmem:[#allocation7 + $0x18] sm:$0xff]
        %v1757 = vld [vmem:[#allocation7 + $0x20] sm:$0xff]
        %v1758 = vld [vmem:[#allocation7 + $0x28] sm:$0xff]
        %v1759 = vld [vmem:[#allocation7 + $0x30] sm:$0xff]
        %v1760 = vld [vmem:[#allocation7 + $0x38] sm:$0xff]
        %1769 = vrot.lane.b32.xlu0 %v1753, 1
        %v1770 = vpop.permute.xlu0 %1769
        %1771 = vrot.lane.b32.xlu0 %v1754, 1
        %v1772 = vpop.permute.xlu0 %1771
        %1773 = vrot.lane.b32.xlu0 %v1755, 1
        %v1774 = vpop.permute.xlu0 %1773
        %1775 = vrot.lane.b32.xlu0 %v1756, 1
        %v1776 = vpop.permute.xlu0 %1775
        %1777 = vrot.lane.b32.xlu0 %v1757, 1
        %v1778 = vpop.permute.xlu0 %1777
        %1779 = vrot.lane.b32.xlu0 %v1758, 1
        %v1780 = vpop.permute.xlu0 %1779
        %1781 = vrot.lane.b32.xlu0 %v1759, 1
        %v1782 = vpop.permute.xlu0 %1781
        %1783 = vrot.lane.b32.xlu0 %v1760, 1
        %v1784 = vpop.permute.xlu0 %1783
        %vm1793 = vcmask 15368
        %1794 = vst.msk [vmem:[%s5] sm:$0xff] %vm1793, %v1770
        %1795 = vst.msk [vmem:[%s5 + $0x8] sm:$0xff] %vm1793, %v1772
        %1796 = vst.msk [vmem:[%s5 + $0x10] sm:$0xff] %vm1793, %v1774
        %1797 = vst.msk [vmem:[%s5 + $0x18] sm:$0xff] %vm1793, %v1776
        %1798 = vst.msk [vmem:[%s5 + $0x20] sm:$0xff] %vm1793, %v1778
        %1799 = vst.msk [vmem:[%s5 + $0x28] sm:$0xff] %vm1793, %v1780
        %1800 = vst.msk [vmem:[%s5 + $0x30] sm:$0xff] %vm1793, %v1782
        %1801 = vst.msk [vmem:[%s5 + $0x38] sm:$0xff] %vm1793, %v1784
      $region52: #{decoder_track_a_forward.2} parent=35 // pred_fallthru
        _
      %s1802 = smul.u32 %s23, %s22
      %s1803 = smul.u32 %s24, %s22
      %s1804 = smul.u32 2, %s1803
      %p1805 = scmp.lt.s32.totalorder %s1802, 1
      %s1806 = scalar_select %p1805, %s1802, 1
      %p1807 = scmp.lt.s32.totalorder %s1804, 1
      %s1808 = scalar_select %p1807, %s1804, 1
      %s1809 = smul.addr %s1806, 16
      %s1810 = sadd.s32 %s1808, %s1809
      %s1811 = smul.addr %s1810, 8
      %s1812 = scalar_lea.vmem %s4, %s1811
      // Predicated region
      $region53: #{decoder_track_a_forward.2} parent=35 // pred_check
        %p1813 = pneg %p151
      $region54: #{decoder_track_a_forward.2} parent=35 // pred_check_branch
        %1815 = sbr.rel (%p1813) target = $region56
      $region55: #{decoder_track_a_forward.2} parent=35 // pred_region
        %s1816 = smul.u32 %s23, %s22
        %s1817 = smul.u32 %s24, %s22
        %s1818 = smul.u32 2, %s1817
      $region56: #{decoder_track_a_forward.2} parent=35 // pred_fallthru
        _
      // Predicated region
      $region57: #{decoder_track_a_forward.2} parent=35 // pred_check
        %p1819 = pneg %p172
      $region58: #{decoder_track_a_forward.2} parent=35 // pred_check_branch
        %1821 = sbr.rel (%p1819) target = $region60
      $region59: #{decoder_track_a_forward.2} parent=35 // pred_region
        _
      $region60: #{decoder_track_a_forward.2} parent=35 // pred_fallthru
        _
      // Predicated region
      $region61: #{decoder_track_a_forward.2} parent=35 // pred_check
        %p1822 = pneg %p172
      $region62: #{decoder_track_a_forward.2} parent=35 // pred_check_branch
        %1824 = sbr.rel (%p1822) target = $region64
      $region63: #{decoder_track_a_forward.2} parent=35 // pred_region
        _
      $region64: #{decoder_track_a_forward.2} parent=35 // pred_fallthru
        _
    $region36: #{decoder_track_a_forward.2} parent=5 // pred_fallthru
      _
    %p1825 = scmp.le.s32.totalorder 2, %s12
    // Predicated region
    $region65: #{decoder_track_a_forward.2} parent=5 // pred_check
      %p1826 = pneg %p1825
    $region66: #{decoder_track_a_forward.2} parent=5 // pred_check_branch
      %1828 = sbr.rel (%p1826) target = $region68
    $region67: #{decoder_track_a_forward.2} parent=5 // pred_region
      %s1829 = ssub.s32 %s12, 2
      // Predicated region
      $region69: #{decoder_track_a_forward.2} parent=67 // pred_check
        %p1830 = pneg %p157
      $region70: #{decoder_track_a_forward.2} parent=67 // pred_check_branch
        %1832 = sbr.rel (%p1830) target = $region72
      $region71: #{decoder_track_a_forward.2} parent=67 // pred_region
        %s1833 = smul.u32 %s26, %s25
        %s1834 = smul.u32 %s27, %s25
        %s1835 = smul.u32 2, %s1834
        %p1836 = scmp.lt.s32.totalorder %s1833, 1
        %s1837 = scalar_select %p1836, %s1833, 1
        %p1838 = scmp.lt.s32.totalorder %s1835, 1
        %s1839 = scalar_select %p1838, %s1835, 1
        %s1840 = smul.addr %s1837, 16
        %s1841 = sadd.s32 %s1839, %s1840
        %s1842 = smul.addr %s1841, 8
        %s1843 = scalar_lea.vmem %s4, %s1842
      $region72: #{decoder_track_a_forward.2} parent=67 // pred_fallthru
        _
    $region68: #{decoder_track_a_forward.2} parent=5 // pred_fallthru
      _
  $region6: #{decoder_track_a_forward.2} parent=0 // loop_footer
    %s16 = sadd.s32 1, %s12
  $region7: #{decoder_track_a_forward.2} parent=0 // loop_footer_branch
    %11 = sbr.rel target = $region3
  $region8: #{decoder_track_a_forward.2} parent=0 // loop_exit
    _

</llo_original>
